<compile_context>
chip_gen: v5e
topology: v5e:2x2
jax: 0.10.0
libtpu: 0.0.40
codegen_flags: <defaults>
</compile_context>

<pallas_src>
import functools
import math

import jax
import jax.numpy as jnp
from jax.experimental import pallas as pl
from jax.experimental.pallas import tpu as pltpu

# ----------------------- config (small, synthetic) -----------------------
BATCH = 2
SEQ = 8
HIDDEN = 32
NUM_HEADS = 4
HEAD_DIM = HIDDEN // NUM_HEADS
VOCAB = 64
MAX_POS = 16
N_LAYER = 2
LN_EPS = 1e-5
INIT_RANGE = 0.02

_GELU_C = math.sqrt(2.0 / math.pi)

# TODO(synk): at realistic GPT-2 sizes, HIDDEN / HEAD_DIM should be multiples
# of 128 lanes and the LM-head vocab dim must be tiled with a grid axis
# (w_lm would not fit v7x's 64 MiB VMEM as one block); at this toy size the
# whole model is trivially VMEM-resident so a single fused block is optimal.


# ----------------------- in-kernel helpers -----------------------
def _layer_norm(x, w, b, eps):
    mu = jnp.mean(x, axis=-1, keepdims=True)
    var = jnp.mean((x - mu) ** 2, axis=-1, keepdims=True)
    return (x - mu) * jax.lax.rsqrt(var + eps) * w + b


def _gelu_new(x):
    # GPT-2 "gelu_new" (tanh approximation)
    return 0.5 * x * (1.0 + jnp.tanh(_GELU_C * (x + 0.044715 * x * x * x)))


# ----------------------- fused transformer kernel -----------------------
def transformer_kernel(x_ref,
                       ln1w_ref, ln1b_ref, wqkv_ref, bqkv_ref,
                       wo_ref, bo_ref, ln2w_ref, ln2b_ref,
                       wfc_ref, bfc_ref, wpr_ref, bpr_ref,
                       lnfw_ref, lnfb_ref, wlm_ref,
                       out_ref,
                       *, n_layer, batch, seq, hidden, num_heads, head_dim,
                       eps):
    bf16 = jnp.bfloat16
    tokens = batch * seq
    x = x_ref[...]                                        # (B*S, H) f32

    # Causal mask, built once and shared by every layer / head.
    row = jax.lax.broadcasted_iota(jnp.int32, (seq, seq), 0)
    col = jax.lax.broadcasted_iota(jnp.int32, (seq, seq), 1)
    causal = (row >= col)[None, :, :]                     # (1, S, S)
    mask_value = float(jnp.finfo(jnp.float32).min)

    for l in range(n_layer):                              # static unroll
        # ---------------- attention (pre-LN) ----------------
        h = _layer_norm(x, ln1w_ref[l], ln1b_ref[l], eps)
        qkv = jnp.dot(h.astype(bf16), wqkv_ref[l],
                      preferred_element_type=jnp.float32) + bqkv_ref[l]
        qkv = qkv.reshape(batch, seq, 3 * hidden)         # leading-dim split only
        wo_l = wo_ref[l]                                  # (NH, HD, H) bf16

        attn = jnp.zeros((tokens, hidden), jnp.float32)
        # Short static loop over heads; each head's score/value matmuls are
        # batched over the whole batch, and the head's slice of c_proj is
        # applied directly (sum over heads) so no lane-dim concatenate occurs.
        for hh in range(num_heads):
            lo = hh * head_dim
            hi = lo + head_dim
            qh = qkv[:, :, lo:hi].astype(bf16)                         # (B,S,HD)
            kh = qkv[:, :, hidden + lo:hidden + hi].astype(bf16)
            vh = qkv[:, :, 2 * hidden + lo:2 * hidden + hi].astype(bf16)
            # NOTE: 1/sqrt(head_dim) is folded into the Q columns of w_qkv.
            s = jnp.einsum('bqd,bkd->bqk', qh, kh,
                           preferred_element_type=jnp.float32)         # (B,S,S)
            s = jnp.where(causal, s, mask_value)
            s = s - jnp.max(s, axis=-1, keepdims=True)
            p = jnp.exp(s)
            p = p * pl.reciprocal(jnp.sum(p, axis=-1, keepdims=True),
                                  approx=True)
            oh = jnp.einsum('bqk,bkd->bqd', p.astype(bf16), vh,
                            preferred_element_type=jnp.float32)        # (B,S,HD)
            oh = oh.reshape(tokens, head_dim).astype(bf16)
            attn = attn + jnp.dot(oh, wo_l[hh],
                                  preferred_element_type=jnp.float32)
        x = x + attn + bo_ref[l]                          # residual 1 (+ c_proj bias once)

        # ---------------- MLP (intermediate_size == hidden_size) -------------
        h2 = _layer_norm(x, ln2w_ref[l], ln2b_ref[l], eps)
        f = jnp.dot(h2.astype(bf16), wfc_ref[l],
                    preferred_element_type=jnp.float32) + bfc_ref[l]
        f = _gelu_new(f)
        f = jnp.dot(f.astype(bf16), wpr_ref[l],
                    preferred_element_type=jnp.float32) + bpr_ref[l]
        x = x + f                                         # residual 2

    # ---------------- final LayerNorm + LM head ----------------
    xf = _layer_norm(x, lnfw_ref[...], lnfb_ref[...], eps)
    # TODO(synk): for real vocab sizes, tile the vocab dim with a grid axis and
    # pad V to a multiple of 128 lanes so the epilogue stores are unmasked.
    out_ref[...] = jnp.dot(xf.astype(bf16), wlm_ref[...],
                           preferred_element_type=jnp.float32)


WEIGHT_ORDER = ("ln1_w", "ln1_b", "w_qkv", "b_qkv", "w_o", "b_o",
                "ln2_w", "ln2_b", "w_fc", "b_fc", "w_pr", "b_pr",
                "lnf_w", "lnf_b", "w_lm")


# ----------------------- parameter init (deterministic) -----------------------
def init_params(key):
    ks = jax.random.split(key, 7)
    proj_std = INIT_RANGE / math.sqrt(2 * N_LAYER)   # _init_weights c_proj rule
    bf16 = jnp.bfloat16

    wte = jax.random.normal(ks[0], (VOCAB, HIDDEN), jnp.float32) * INIT_RANGE
    wpe = jax.random.normal(ks[1], (MAX_POS, HIDDEN), jnp.float32) * INIT_RANGE

    # proj_attn (Conv1D): weight (H, 3H).  Fold 1/sqrt(head_dim) into the Q
    # columns (and bias) — one-time weight transform.
    w_qkv = (jax.random.normal(ks[2], (N_LAYER, HIDDEN, 3 * HIDDEN),
                               jnp.float32) * INIT_RANGE)
    q_scale = 1.0 / math.sqrt(HEAD_DIM)
    w_qkv = w_qkv.at[:, :, :HIDDEN].multiply(q_scale)
    b_qkv = jnp.zeros((N_LAYER, 1, 3 * HIDDEN), jnp.float32)  # zeros; scale is a no-op

    # attn c_proj: stored pre-split by head as (L, NH, HD, H) so the kernel can
    # index whole head slices without lane slicing a packed bf16 value.
    w_o = (jax.random.normal(ks[3], (N_LAYER, HIDDEN, HIDDEN), jnp.float32)
           * proj_std).reshape(N_LAYER, NUM_HEADS, HEAD_DIM, HIDDEN)
    b_o = jnp.zeros((N_LAYER, 1, HIDDEN), jnp.float32)

    w_fc = (jax.random.normal(ks[4], (N_LAYER, HIDDEN, HIDDEN), jnp.float32)
            * INIT_RANGE)
    b_fc = jnp.zeros((N_LAYER, 1, HIDDEN), jnp.float32)
    w_pr = (jax.random.normal(ks[5], (N_LAYER, HIDDEN, HIDDEN), jnp.float32)
            * proj_std)
    b_pr = jnp.zeros((N_LAYER, 1, HIDDEN), jnp.float32)

    # nn.Linear(n_embd, vocab, bias=False): weight (V, H) -> pre-transpose to (H, V)
    w_lm = (jax.random.normal(ks[6], (VOCAB, HIDDEN), jnp.float32)
            * INIT_RANGE).T

    return {
        "wte": wte, "wpe": wpe,
        "ln1_w": jnp.ones((N_LAYER, 1, HIDDEN), jnp.float32),
        "ln1_b": jnp.zeros((N_LAYER, 1, HIDDEN), jnp.float32),
        "w_qkv": w_qkv.astype(bf16), "b_qkv": b_qkv,
        "w_o": w_o.astype(bf16), "b_o": b_o,
        "ln2_w": jnp.ones((N_LAYER, 1, HIDDEN), jnp.float32),
        "ln2_b": jnp.zeros((N_LAYER, 1, HIDDEN), jnp.float32),
        "w_fc": w_fc.astype(bf16), "b_fc": b_fc,
        "w_pr": w_pr.astype(bf16), "b_pr": b_pr,
        "lnf_w": jnp.ones((1, HIDDEN), jnp.float32),
        "lnf_b": jnp.zeros((1, HIDDEN), jnp.float32),
        "w_lm": w_lm.astype(bf16),
    }


# ----------------------- full forward -----------------------
@jax.jit
def my_transformer_forward(params, input_ids):
    B, S = input_ids.shape
    # glue: embedding gathers in plain JAX (dropout layers are identity at inference)
    tok = jnp.take(params["wte"], input_ids, axis=0)          # (B, S, H)
    pos = jnp.take(params["wpe"], jnp.arange(S), axis=0)      # (S, H)
    hidden = (tok + pos[None, :, :]).reshape(B * S, HIDDEN)   # one (B*S, H) slab

    kern = functools.partial(
        transformer_kernel, n_layer=N_LAYER, batch=B, seq=S, hidden=HIDDEN,
        num_heads=NUM_HEADS, head_dim=HEAD_DIM, eps=LN_EPS)
    weights = [params[name] for name in WEIGHT_ORDER]
    vmem_spec = pl.BlockSpec(memory_space=pltpu.MemorySpace.VMEM)

    logits = pl.pallas_call(
        kern,
        out_shape=jax.ShapeDtypeStruct((B * S, VOCAB), jnp.float32),
        in_specs=[vmem_spec] * (1 + len(weights)),
        out_specs=vmem_spec,
    )(hidden, *weights)
    return logits.reshape(B, S, VOCAB)


if __name__ == "__main__":
    key = jax.random.PRNGKey(0)
    pkey, ikey = jax.random.split(key)
    params = init_params(pkey)
    input_ids = jax.random.randint(ikey, (BATCH, SEQ), 0, VOCAB)

    logits = my_transformer_forward(params, input_ids)
    jax.block_until_ready(logits)
    assert logits.shape == (BATCH, SEQ, VOCAB)
    print("KERNEL_OK")
</pallas_src>

<mosaic_0001>
module attributes {stable_mosaic.version = 11 : i64} {
  func.func @transformer_kernel(%arg0: memref<16x32xf32, #tpu.memory_space<vmem>>, %arg1: memref<2x1x32xf32, #tpu.memory_space<vmem>>, %arg2: memref<2x1x32xf32, #tpu.memory_space<vmem>>, %arg3: memref<2x32x96xbf16, #tpu.memory_space<vmem>>, %arg4: memref<2x1x96xf32, #tpu.memory_space<vmem>>, %arg5: memref<2x4x8x32xbf16, #tpu.memory_space<vmem>>, %arg6: memref<2x1x32xf32, #tpu.memory_space<vmem>>, %arg7: memref<2x1x32xf32, #tpu.memory_space<vmem>>, %arg8: memref<2x1x32xf32, #tpu.memory_space<vmem>>, %arg9: memref<2x32x32xbf16, #tpu.memory_space<vmem>>, %arg10: memref<2x1x32xf32, #tpu.memory_space<vmem>>, %arg11: memref<2x32x32xbf16, #tpu.memory_space<vmem>>, %arg12: memref<2x1x32xf32, #tpu.memory_space<vmem>>, %arg13: memref<1x32xf32, #tpu.memory_space<vmem>>, %arg14: memref<1x32xf32, #tpu.memory_space<vmem>>, %arg15: memref<32x64xbf16, #tpu.memory_space<vmem>>, %arg16: memref<16x64xf32, #tpu.memory_space<vmem>>) attributes {dimension_semantics = [], scalar_prefetch = 0 : i64, scratch_operands = 0 : i64, tpu.core_type = #tpu.core_type<tc>} {
    %c0 = arith.constant 0 : index
    %c0_0 = arith.constant 0 : index
    %0 = vector.load %arg0[%c0, %c0_0] : memref<16x32xf32, #tpu.memory_space<vmem>>, vector<16x32xf32>
    %1 = tpu.iota {dimensions = array<i32: 0>} : vector<8x8xi32>
    %2 = tpu.iota {dimensions = array<i32: 1>} : vector<8x8xi32>
    %3 = arith.cmpi sge, %1, %2 : vector<8x8xi32>
    %4 = vector.shape_cast %3 : vector<8x8xi1> to vector<1x8x8xi1>
    %c0_1 = arith.constant 0 : index
    %c0_2 = arith.constant 0 : index
    %c0_3 = arith.constant 0 : index
    %5 = vector.load %arg1[%c0_1, %c0_2, %c0_3] : memref<2x1x32xf32, #tpu.memory_space<vmem>>, vector<1x1x32xf32>
    %6 = vector.shape_cast %5 : vector<1x1x32xf32> to vector<1x32xf32>
    %c0_4 = arith.constant 0 : index
    %c0_5 = arith.constant 0 : index
    %c0_6 = arith.constant 0 : index
    %7 = vector.load %arg2[%c0_4, %c0_5, %c0_6] : memref<2x1x32xf32, #tpu.memory_space<vmem>>, vector<1x1x32xf32>
    %8 = vector.shape_cast %7 : vector<1x1x32xf32> to vector<1x32xf32>
    %cst = arith.constant dense<0.000000e+00> : vector<16xf32>
    %9 = vector.multi_reduction <add>, %0, %cst [1] : vector<16x32xf32> to vector<16xf32>
    %10 = vector.shape_cast %9 : vector<16xf32> to vector<16x1xf32>
    %cst_7 = arith.constant 3.200000e+01 : f32
    %11 = vector.broadcast %cst_7 : f32 to vector<16x1xf32>
    %12 = arith.divf %10, %11 : vector<16x1xf32>
    %13 = vector.broadcast %12 : vector<16x1xf32> to vector<16x32xf32>
    %14 = arith.subf %0, %13 : vector<16x32xf32>
    %15 = arith.mulf %14, %14 : vector<16x32xf32>
    %cst_8 = arith.constant dense<0.000000e+00> : vector<16xf32>
    %16 = vector.multi_reduction <add>, %15, %cst_8 [1] : vector<16x32xf32> to vector<16xf32>
    %17 = vector.shape_cast %16 : vector<16xf32> to vector<16x1xf32>
    %cst_9 = arith.constant 3.200000e+01 : f32
    %18 = vector.broadcast %cst_9 : f32 to vector<16x1xf32>
    %19 = arith.divf %17, %18 : vector<16x1xf32>
    %20 = vector.broadcast %12 : vector<16x1xf32> to vector<16x32xf32>
    %21 = arith.subf %0, %20 : vector<16x32xf32>
    %cst_10 = arith.constant 9.99999974E-6 : f32
    %22 = vector.broadcast %cst_10 : f32 to vector<16x1xf32>
    %23 = arith.addf %19, %22 : vector<16x1xf32>
    %24 = math.rsqrt %23 : vector<16x1xf32>
    %25 = vector.broadcast %24 : vector<16x1xf32> to vector<16x32xf32>
    %26 = arith.mulf %21, %25 : vector<16x32xf32>
    %27 = vector.broadcast %6 : vector<1x32xf32> to vector<16x32xf32>
    %28 = arith.mulf %26, %27 : vector<16x32xf32>
    %29 = vector.broadcast %8 : vector<1x32xf32> to vector<16x32xf32>
    %30 = arith.addf %28, %29 : vector<16x32xf32>
    %31 = arith.truncf %30 : vector<16x32xf32> to vector<16x32xbf16>
    %c0_11 = arith.constant 0 : index
    %c0_12 = arith.constant 0 : index
    %c0_13 = arith.constant 0 : index
    %32 = vector.load %arg3[%c0_11, %c0_12, %c0_13] : memref<2x32x96xbf16, #tpu.memory_space<vmem>>, vector<1x32x96xbf16>
    %33 = vector.shape_cast %32 : vector<1x32x96xbf16> to vector<32x96xbf16>
    %cst_14 = arith.constant dense<0.000000e+00> : vector<16x96xf32>
    %34 = tpu.matmul %31, %33, %cst_14 {dimension_numbers = #tpu.dot_dimension_numbers<[1], [0], [0], [1], [0, 0, 1, 1], [], []>} : vector<16x32xbf16>, vector<32x96xbf16>, vector<16x96xf32> -> vector<16x96xf32>
    %c0_15 = arith.constant 0 : index
    %c0_16 = arith.constant 0 : index
    %c0_17 = arith.constant 0 : index
    %35 = vector.load %arg4[%c0_15, %c0_16, %c0_17] : memref<2x1x96xf32, #tpu.memory_space<vmem>>, vector<1x1x96xf32>
    %36 = vector.shape_cast %35 : vector<1x1x96xf32> to vector<1x96xf32>
    %37 = vector.broadcast %36 : vector<1x96xf32> to vector<16x96xf32>
    %38 = arith.addf %34, %37 : vector<16x96xf32>
    %39 = vector.shape_cast %38 : vector<16x96xf32> to vector<2x8x96xf32>
    %c0_18 = arith.constant 0 : index
    %c0_19 = arith.constant 0 : index
    %c0_20 = arith.constant 0 : index
    %c0_21 = arith.constant 0 : index
    %40 = vector.load %arg5[%c0_18, %c0_19, %c0_20, %c0_21] : memref<2x4x8x32xbf16, #tpu.memory_space<vmem>>, vector<1x4x8x32xbf16>
    %41 = vector.shape_cast %40 : vector<1x4x8x32xbf16> to vector<4x8x32xbf16>
    %cst_22 = arith.constant 0.000000e+00 : f32
    %42 = vector.broadcast %cst_22 : f32 to vector<16x32xf32>
    %43 = vector.extract_strided_slice %39 {offsets = [0, 0, 0], sizes = [2, 8, 8], strides = [1, 1, 1]} : vector<2x8x96xf32> to vector<2x8x8xf32>
    %44 = arith.truncf %43 : vector<2x8x8xf32> to vector<2x8x8xbf16>
    %45 = vector.extract_strided_slice %39 {offsets = [0, 0, 32], sizes = [2, 8, 8], strides = [1, 1, 1]} : vector<2x8x96xf32> to vector<2x8x8xf32>
    %46 = arith.truncf %45 : vector<2x8x8xf32> to vector<2x8x8xbf16>
    %47 = vector.extract_strided_slice %39 {offsets = [0, 0, 64], sizes = [2, 8, 8], strides = [1, 1, 1]} : vector<2x8x96xf32> to vector<2x8x8xf32>
    %48 = arith.truncf %47 : vector<2x8x8xf32> to vector<2x8x8xbf16>
    "tpu.trace_start"() <{level = 10 : i32, message = "bqd,bkd->bqk"}> : () -> ()
    %cst_23 = arith.constant dense<0.000000e+00> : vector<2x8x8xf32>
    %49 = tpu.matmul %44, %46, %cst_23 {dimension_numbers = #tpu.dot_dimension_numbers<[2], [2], [1], [1], [0, 0, 0, 1, 1, 1], [0], [0]>} : vector<2x8x8xbf16>, vector<2x8x8xbf16>, vector<2x8x8xf32> -> vector<2x8x8xf32>
    %cst_24 = arith.constant -3.40282347E+38 : f32
    "tpu.trace_stop"() : () -> ()
    %50 = vector.shape_cast %4 : vector<1x8x8xi1> to vector<1x8x8xi1>
    %51 = vector.broadcast %50 : vector<1x8x8xi1> to vector<2x8x8xi1>
    %52 = vector.broadcast %cst_24 : f32 to vector<2x8x8xf32>
    %53 = arith.select %51, %49, %52 : vector<2x8x8xi1>, vector<2x8x8xf32>
    %cst_25 = arith.constant dense<0xFF800000> : vector<2x8xf32>
    %54 = vector.multi_reduction <maximumf>, %53, %cst_25 [2] : vector<2x8x8xf32> to vector<2x8xf32>
    %55 = vector.shape_cast %54 : vector<2x8xf32> to vector<2x8x1xf32>
    %56 = vector.broadcast %55 : vector<2x8x1xf32> to vector<2x8x8xf32>
    %57 = arith.subf %53, %56 : vector<2x8x8xf32>
    %58 = math.exp %57 : vector<2x8x8xf32>
    %cst_26 = arith.constant dense<0.000000e+00> : vector<2x8xf32>
    %59 = vector.multi_reduction <add>, %58, %cst_26 [2] : vector<2x8x8xf32> to vector<2x8xf32>
    %60 = vector.shape_cast %59 : vector<2x8xf32> to vector<2x8x1xf32>
    %61 = tpu.reciprocal %60 {approx = true} : vector<2x8x1xf32> -> vector<2x8x1xf32>
    %62 = vector.broadcast %61 : vector<2x8x1xf32> to vector<2x8x8xf32>
    %63 = arith.mulf %58, %62 : vector<2x8x8xf32>
    %64 = arith.truncf %63 : vector<2x8x8xf32> to vector<2x8x8xbf16>
    "tpu.trace_start"() <{level = 10 : i32, message = "bqk,bkd->bqd"}> : () -> ()
    %cst_27 = arith.constant dense<0.000000e+00> : vector<2x8x8xf32>
    %65 = tpu.matmul %64, %48, %cst_27 {dimension_numbers = #tpu.dot_dimension_numbers<[2], [1], [1], [2], [0, 0, 0, 1, 1, 2], [0], [0]>} : vector<2x8x8xbf16>, vector<2x8x8xbf16>, vector<2x8x8xf32> -> vector<2x8x8xf32>
    "tpu.trace_stop"() : () -> ()
    %66 = vector.shape_cast %65 : vector<2x8x8xf32> to vector<16x8xf32>
    %67 = arith.truncf %66 : vector<16x8xf32> to vector<16x8xbf16>
    %68 = vector.extract_strided_slice %41 {offsets = [0, 0, 0], sizes = [1, 8, 32], strides = [1, 1, 1]} : vector<4x8x32xbf16> to vector<1x8x32xbf16>
    %69 = vector.shape_cast %68 : vector<1x8x32xbf16> to vector<8x32xbf16>
    %cst_28 = arith.constant dense<0.000000e+00> : vector<16x32xf32>
    %70 = tpu.matmul %67, %69, %cst_28 {dimension_numbers = #tpu.dot_dimension_numbers<[1], [0], [0], [1], [0, 0, 1, 1], [], []>} : vector<16x8xbf16>, vector<8x32xbf16>, vector<16x32xf32> -> vector<16x32xf32>
    %71 = arith.addf %42, %70 : vector<16x32xf32>
    %72 = vector.extract_strided_slice %39 {offsets = [0, 0, 8], sizes = [2, 8, 8], strides = [1, 1, 1]} : vector<2x8x96xf32> to vector<2x8x8xf32>
    %73 = arith.truncf %72 : vector<2x8x8xf32> to vector<2x8x8xbf16>
    %74 = vector.extract_strided_slice %39 {offsets = [0, 0, 40], sizes = [2, 8, 8], strides = [1, 1, 1]} : vector<2x8x96xf32> to vector<2x8x8xf32>
    %75 = arith.truncf %74 : vector<2x8x8xf32> to vector<2x8x8xbf16>
    %76 = vector.extract_strided_slice %39 {offsets = [0, 0, 72], sizes = [2, 8, 8], strides = [1, 1, 1]} : vector<2x8x96xf32> to vector<2x8x8xf32>
    %77 = arith.truncf %76 : vector<2x8x8xf32> to vector<2x8x8xbf16>
    "tpu.trace_start"() <{level = 10 : i32, message = "bqd,bkd->bqk"}> : () -> ()
    %cst_29 = arith.constant dense<0.000000e+00> : vector<2x8x8xf32>
    %78 = tpu.matmul %73, %75, %cst_29 {dimension_numbers = #tpu.dot_dimension_numbers<[2], [2], [1], [1], [0, 0, 0, 1, 1, 1], [0], [0]>} : vector<2x8x8xbf16>, vector<2x8x8xbf16>, vector<2x8x8xf32> -> vector<2x8x8xf32>
    %cst_30 = arith.constant -3.40282347E+38 : f32
    "tpu.trace_stop"() : () -> ()
    %79 = vector.shape_cast %4 : vector<1x8x8xi1> to vector<1x8x8xi1>
    %80 = vector.broadcast %79 : vector<1x8x8xi1> to vector<2x8x8xi1>
    %81 = vector.broadcast %cst_30 : f32 to vector<2x8x8xf32>
    %82 = arith.select %80, %78, %81 : vector<2x8x8xi1>, vector<2x8x8xf32>
    %cst_31 = arith.constant dense<0xFF800000> : vector<2x8xf32>
    %83 = vector.multi_reduction <maximumf>, %82, %cst_31 [2] : vector<2x8x8xf32> to vector<2x8xf32>
    %84 = vector.shape_cast %83 : vector<2x8xf32> to vector<2x8x1xf32>
    %85 = vector.broadcast %84 : vector<2x8x1xf32> to vector<2x8x8xf32>
    %86 = arith.subf %82, %85 : vector<2x8x8xf32>
    %87 = math.exp %86 : vector<2x8x8xf32>
    %cst_32 = arith.constant dense<0.000000e+00> : vector<2x8xf32>
    %88 = vector.multi_reduction <add>, %87, %cst_32 [2] : vector<2x8x8xf32> to vector<2x8xf32>
    %89 = vector.shape_cast %88 : vector<2x8xf32> to vector<2x8x1xf32>
    %90 = tpu.reciprocal %89 {approx = true} : vector<2x8x1xf32> -> vector<2x8x1xf32>
    %91 = vector.broadcast %90 : vector<2x8x1xf32> to vector<2x8x8xf32>
    %92 = arith.mulf %87, %91 : vector<2x8x8xf32>
    %93 = arith.truncf %92 : vector<2x8x8xf32> to vector<2x8x8xbf16>
    "tpu.trace_start"() <{level = 10 : i32, message = "bqk,bkd->bqd"}> : () -> ()
    %cst_33 = arith.constant dense<0.000000e+00> : vector<2x8x8xf32>
    %94 = tpu.matmul %93, %77, %cst_33 {dimension_numbers = #tpu.dot_dimension_numbers<[2], [1], [1], [2], [0, 0, 0, 1, 1, 2], [0], [0]>} : vector<2x8x8xbf16>, vector<2x8x8xbf16>, vector<2x8x8xf32> -> vector<2x8x8xf32>
    "tpu.trace_stop"() : () -> ()
    %95 = vector.shape_cast %94 : vector<2x8x8xf32> to vector<16x8xf32>
    %96 = arith.truncf %95 : vector<16x8xf32> to vector<16x8xbf16>
    %97 = vector.extract_strided_slice %41 {offsets = [1, 0, 0], sizes = [1, 8, 32], strides = [1, 1, 1]} : vector<4x8x32xbf16> to vector<1x8x32xbf16>
    %98 = vector.shape_cast %97 : vector<1x8x32xbf16> to vector<8x32xbf16>
    %cst_34 = arith.constant dense<0.000000e+00> : vector<16x32xf32>
    %99 = tpu.matmul %96, %98, %cst_34 {dimension_numbers = #tpu.dot_dimension_numbers<[1], [0], [0], [1], [0, 0, 1, 1], [], []>} : vector<16x8xbf16>, vector<8x32xbf16>, vector<16x32xf32> -> vector<16x32xf32>
    %100 = arith.addf %71, %99 : vector<16x32xf32>
    %101 = vector.extract_strided_slice %39 {offsets = [0, 0, 16], sizes = [2, 8, 8], strides = [1, 1, 1]} : vector<2x8x96xf32> to vector<2x8x8xf32>
    %102 = arith.truncf %101 : vector<2x8x8xf32> to vector<2x8x8xbf16>
    %103 = vector.extract_strided_slice %39 {offsets = [0, 0, 48], sizes = [2, 8, 8], strides = [1, 1, 1]} : vector<2x8x96xf32> to vector<2x8x8xf32>
    %104 = arith.truncf %103 : vector<2x8x8xf32> to vector<2x8x8xbf16>
    %105 = vector.extract_strided_slice %39 {offsets = [0, 0, 80], sizes = [2, 8, 8], strides = [1, 1, 1]} : vector<2x8x96xf32> to vector<2x8x8xf32>
    %106 = arith.truncf %105 : vector<2x8x8xf32> to vector<2x8x8xbf16>
    "tpu.trace_start"() <{level = 10 : i32, message = "bqd,bkd->bqk"}> : () -> ()
    %cst_35 = arith.constant dense<0.000000e+00> : vector<2x8x8xf32>
    %107 = tpu.matmul %102, %104, %cst_35 {dimension_numbers = #tpu.dot_dimension_numbers<[2], [2], [1], [1], [0, 0, 0, 1, 1, 1], [0], [0]>} : vector<2x8x8xbf16>, vector<2x8x8xbf16>, vector<2x8x8xf32> -> vector<2x8x8xf32>
    %cst_36 = arith.constant -3.40282347E+38 : f32
    "tpu.trace_stop"() : () -> ()
    %108 = vector.shape_cast %4 : vector<1x8x8xi1> to vector<1x8x8xi1>
    %109 = vector.broadcast %108 : vector<1x8x8xi1> to vector<2x8x8xi1>
    %110 = vector.broadcast %cst_36 : f32 to vector<2x8x8xf32>
    %111 = arith.select %109, %107, %110 : vector<2x8x8xi1>, vector<2x8x8xf32>
    %cst_37 = arith.constant dense<0xFF800000> : vector<2x8xf32>
    %112 = vector.multi_reduction <maximumf>, %111, %cst_37 [2] : vector<2x8x8xf32> to vector<2x8xf32>
    %113 = vector.shape_cast %112 : vector<2x8xf32> to vector<2x8x1xf32>
    %114 = vector.broadcast %113 : vector<2x8x1xf32> to vector<2x8x8xf32>
    %115 = arith.subf %111, %114 : vector<2x8x8xf32>
    %116 = math.exp %115 : vector<2x8x8xf32>
    %cst_38 = arith.constant dense<0.000000e+00> : vector<2x8xf32>
    %117 = vector.multi_reduction <add>, %116, %cst_38 [2] : vector<2x8x8xf32> to vector<2x8xf32>
    %118 = vector.shape_cast %117 : vector<2x8xf32> to vector<2x8x1xf32>
    %119 = tpu.reciprocal %118 {approx = true} : vector<2x8x1xf32> -> vector<2x8x1xf32>
    %120 = vector.broadcast %119 : vector<2x8x1xf32> to vector<2x8x8xf32>
    %121 = arith.mulf %116, %120 : vector<2x8x8xf32>
    %122 = arith.truncf %121 : vector<2x8x8xf32> to vector<2x8x8xbf16>
    "tpu.trace_start"() <{level = 10 : i32, message = "bqk,bkd->bqd"}> : () -> ()
    %cst_39 = arith.constant dense<0.000000e+00> : vector<2x8x8xf32>
    %123 = tpu.matmul %122, %106, %cst_39 {dimension_numbers = #tpu.dot_dimension_numbers<[2], [1], [1], [2], [0, 0, 0, 1, 1, 2], [0], [0]>} : vector<2x8x8xbf16>, vector<2x8x8xbf16>, vector<2x8x8xf32> -> vector<2x8x8xf32>
    "tpu.trace_stop"() : () -> ()
    %124 = vector.shape_cast %123 : vector<2x8x8xf32> to vector<16x8xf32>
    %125 = arith.truncf %124 : vector<16x8xf32> to vector<16x8xbf16>
    %126 = vector.extract_strided_slice %41 {offsets = [2, 0, 0], sizes = [1, 8, 32], strides = [1, 1, 1]} : vector<4x8x32xbf16> to vector<1x8x32xbf16>
    %127 = vector.shape_cast %126 : vector<1x8x32xbf16> to vector<8x32xbf16>
    %cst_40 = arith.constant dense<0.000000e+00> : vector<16x32xf32>
    %128 = tpu.matmul %125, %127, %cst_40 {dimension_numbers = #tpu.dot_dimension_numbers<[1], [0], [0], [1], [0, 0, 1, 1], [], []>} : vector<16x8xbf16>, vector<8x32xbf16>, vector<16x32xf32> -> vector<16x32xf32>
    %129 = arith.addf %100, %128 : vector<16x32xf32>
    %130 = vector.extract_strided_slice %39 {offsets = [0, 0, 24], sizes = [2, 8, 8], strides = [1, 1, 1]} : vector<2x8x96xf32> to vector<2x8x8xf32>
    %131 = arith.truncf %130 : vector<2x8x8xf32> to vector<2x8x8xbf16>
    %132 = vector.extract_strided_slice %39 {offsets = [0, 0, 56], sizes = [2, 8, 8], strides = [1, 1, 1]} : vector<2x8x96xf32> to vector<2x8x8xf32>
    %133 = arith.truncf %132 : vector<2x8x8xf32> to vector<2x8x8xbf16>
    %134 = vector.extract_strided_slice %39 {offsets = [0, 0, 88], sizes = [2, 8, 8], strides = [1, 1, 1]} : vector<2x8x96xf32> to vector<2x8x8xf32>
    %135 = arith.truncf %134 : vector<2x8x8xf32> to vector<2x8x8xbf16>
    "tpu.trace_start"() <{level = 10 : i32, message = "bqd,bkd->bqk"}> : () -> ()
    %cst_41 = arith.constant dense<0.000000e+00> : vector<2x8x8xf32>
    %136 = tpu.matmul %131, %133, %cst_41 {dimension_numbers = #tpu.dot_dimension_numbers<[2], [2], [1], [1], [0, 0, 0, 1, 1, 1], [0], [0]>} : vector<2x8x8xbf16>, vector<2x8x8xbf16>, vector<2x8x8xf32> -> vector<2x8x8xf32>
    %cst_42 = arith.constant -3.40282347E+38 : f32
    "tpu.trace_stop"() : () -> ()
    %137 = vector.shape_cast %4 : vector<1x8x8xi1> to vector<1x8x8xi1>
    %138 = vector.broadcast %137 : vector<1x8x8xi1> to vector<2x8x8xi1>
    %139 = vector.broadcast %cst_42 : f32 to vector<2x8x8xf32>
    %140 = arith.select %138, %136, %139 : vector<2x8x8xi1>, vector<2x8x8xf32>
    %cst_43 = arith.constant dense<0xFF800000> : vector<2x8xf32>
    %141 = vector.multi_reduction <maximumf>, %140, %cst_43 [2] : vector<2x8x8xf32> to vector<2x8xf32>
    %142 = vector.shape_cast %141 : vector<2x8xf32> to vector<2x8x1xf32>
    %143 = vector.broadcast %142 : vector<2x8x1xf32> to vector<2x8x8xf32>
    %144 = arith.subf %140, %143 : vector<2x8x8xf32>
    %145 = math.exp %144 : vector<2x8x8xf32>
    %cst_44 = arith.constant dense<0.000000e+00> : vector<2x8xf32>
    %146 = vector.multi_reduction <add>, %145, %cst_44 [2] : vector<2x8x8xf32> to vector<2x8xf32>
    %147 = vector.shape_cast %146 : vector<2x8xf32> to vector<2x8x1xf32>
    %148 = tpu.reciprocal %147 {approx = true} : vector<2x8x1xf32> -> vector<2x8x1xf32>
    %149 = vector.broadcast %148 : vector<2x8x1xf32> to vector<2x8x8xf32>
    %150 = arith.mulf %145, %149 : vector<2x8x8xf32>
    %151 = arith.truncf %150 : vector<2x8x8xf32> to vector<2x8x8xbf16>
    "tpu.trace_start"() <{level = 10 : i32, message = "bqk,bkd->bqd"}> : () -> ()
    %cst_45 = arith.constant dense<0.000000e+00> : vector<2x8x8xf32>
    %152 = tpu.matmul %151, %135, %cst_45 {dimension_numbers = #tpu.dot_dimension_numbers<[2], [1], [1], [2], [0, 0, 0, 1, 1, 2], [0], [0]>} : vector<2x8x8xbf16>, vector<2x8x8xbf16>, vector<2x8x8xf32> -> vector<2x8x8xf32>
    "tpu.trace_stop"() : () -> ()
    %153 = vector.shape_cast %152 : vector<2x8x8xf32> to vector<16x8xf32>
    %154 = arith.truncf %153 : vector<16x8xf32> to vector<16x8xbf16>
    %155 = vector.extract_strided_slice %41 {offsets = [3, 0, 0], sizes = [1, 8, 32], strides = [1, 1, 1]} : vector<4x8x32xbf16> to vector<1x8x32xbf16>
    %156 = vector.shape_cast %155 : vector<1x8x32xbf16> to vector<8x32xbf16>
    %cst_46 = arith.constant dense<0.000000e+00> : vector<16x32xf32>
    %157 = tpu.matmul %154, %156, %cst_46 {dimension_numbers = #tpu.dot_dimension_numbers<[1], [0], [0], [1], [0, 0, 1, 1], [], []>} : vector<16x8xbf16>, vector<8x32xbf16>, vector<16x32xf32> -> vector<16x32xf32>
    %158 = arith.addf %129, %157 : vector<16x32xf32>
    %159 = arith.addf %0, %158 : vector<16x32xf32>
    %c0_47 = arith.constant 0 : index
    %c0_48 = arith.constant 0 : index
    %c0_49 = arith.constant 0 : index
    %160 = vector.load %arg6[%c0_47, %c0_48, %c0_49] : memref<2x1x32xf32, #tpu.memory_space<vmem>>, vector<1x1x32xf32>
    %161 = vector.shape_cast %160 : vector<1x1x32xf32> to vector<1x32xf32>
    %162 = vector.broadcast %161 : vector<1x32xf32> to vector<16x32xf32>
    %163 = arith.addf %159, %162 : vector<16x32xf32>
    %c0_50 = arith.constant 0 : index
    %c0_51 = arith.constant 0 : index
    %c0_52 = arith.constant 0 : index
    %164 = vector.load %arg7[%c0_50, %c0_51, %c0_52] : memref<2x1x32xf32, #tpu.memory_space<vmem>>, vector<1x1x32xf32>
    %165 = vector.shape_cast %164 : vector<1x1x32xf32> to vector<1x32xf32>
    %c0_53 = arith.constant 0 : index
    %c0_54 = arith.constant 0 : index
    %c0_55 = arith.constant 0 : index
    %166 = vector.load %arg8[%c0_53, %c0_54, %c0_55] : memref<2x1x32xf32, #tpu.memory_space<vmem>>, vector<1x1x32xf32>
    %167 = vector.shape_cast %166 : vector<1x1x32xf32> to vector<1x32xf32>
    %cst_56 = arith.constant dense<0.000000e+00> : vector<16xf32>
    %168 = vector.multi_reduction <add>, %163, %cst_56 [1] : vector<16x32xf32> to vector<16xf32>
    %169 = vector.shape_cast %168 : vector<16xf32> to vector<16x1xf32>
    %cst_57 = arith.constant 3.200000e+01 : f32
    %170 = vector.broadcast %cst_57 : f32 to vector<16x1xf32>
    %171 = arith.divf %169, %170 : vector<16x1xf32>
    %172 = vector.broadcast %171 : vector<16x1xf32> to vector<16x32xf32>
    %173 = arith.subf %163, %172 : vector<16x32xf32>
    %174 = arith.mulf %173, %173 : vector<16x32xf32>
    %cst_58 = arith.constant dense<0.000000e+00> : vector<16xf32>
    %175 = vector.multi_reduction <add>, %174, %cst_58 [1] : vector<16x32xf32> to vector<16xf32>
    %176 = vector.shape_cast %175 : vector<16xf32> to vector<16x1xf32>
    %cst_59 = arith.constant 3.200000e+01 : f32
    %177 = vector.broadcast %cst_59 : f32 to vector<16x1xf32>
    %178 = arith.divf %176, %177 : vector<16x1xf32>
    %179 = vector.broadcast %171 : vector<16x1xf32> to vector<16x32xf32>
    %180 = arith.subf %163, %179 : vector<16x32xf32>
    %cst_60 = arith.constant 9.99999974E-6 : f32
    %181 = vector.broadcast %cst_60 : f32 to vector<16x1xf32>
    %182 = arith.addf %178, %181 : vector<16x1xf32>
    %183 = math.rsqrt %182 : vector<16x1xf32>
    %184 = vector.broadcast %183 : vector<16x1xf32> to vector<16x32xf32>
    %185 = arith.mulf %180, %184 : vector<16x32xf32>
    %186 = vector.broadcast %165 : vector<1x32xf32> to vector<16x32xf32>
    %187 = arith.mulf %185, %186 : vector<16x32xf32>
    %188 = vector.broadcast %167 : vector<1x32xf32> to vector<16x32xf32>
    %189 = arith.addf %187, %188 : vector<16x32xf32>
    %190 = arith.truncf %189 : vector<16x32xf32> to vector<16x32xbf16>
    %c0_61 = arith.constant 0 : index
    %c0_62 = arith.constant 0 : index
    %c0_63 = arith.constant 0 : index
    %191 = vector.load %arg9[%c0_61, %c0_62, %c0_63] : memref<2x32x32xbf16, #tpu.memory_space<vmem>>, vector<1x32x32xbf16>
    %192 = vector.shape_cast %191 : vector<1x32x32xbf16> to vector<32x32xbf16>
    %cst_64 = arith.constant dense<0.000000e+00> : vector<16x32xf32>
    %193 = tpu.matmul %190, %192, %cst_64 {dimension_numbers = #tpu.dot_dimension_numbers<[1], [0], [0], [1], [0, 0, 1, 1], [], []>} : vector<16x32xbf16>, vector<32x32xbf16>, vector<16x32xf32> -> vector<16x32xf32>
    %c0_65 = arith.constant 0 : index
    %c0_66 = arith.constant 0 : index
    %c0_67 = arith.constant 0 : index
    %194 = vector.load %arg10[%c0_65, %c0_66, %c0_67] : memref<2x1x32xf32, #tpu.memory_space<vmem>>, vector<1x1x32xf32>
    %195 = vector.shape_cast %194 : vector<1x1x32xf32> to vector<1x32xf32>
    %196 = vector.broadcast %195 : vector<1x32xf32> to vector<16x32xf32>
    %197 = arith.addf %193, %196 : vector<16x32xf32>
    %cst_68 = arith.constant 5.000000e-01 : f32
    %198 = vector.broadcast %cst_68 : f32 to vector<16x32xf32>
    %199 = arith.mulf %198, %197 : vector<16x32xf32>
    %cst_69 = arith.constant 4.471500e-02 : f32
    %200 = vector.broadcast %cst_69 : f32 to vector<16x32xf32>
    %201 = arith.mulf %200, %197 : vector<16x32xf32>
    %202 = arith.mulf %201, %197 : vector<16x32xf32>
    %203 = arith.mulf %202, %197 : vector<16x32xf32>
    %204 = arith.addf %197, %203 : vector<16x32xf32>
    %cst_70 = arith.constant 0.797884583 : f32
    %205 = vector.broadcast %cst_70 : f32 to vector<16x32xf32>
    %206 = arith.mulf %205, %204 : vector<16x32xf32>
    %207 = math.tanh %206 : vector<16x32xf32>
    %cst_71 = arith.constant 1.000000e+00 : f32
    %208 = vector.broadcast %cst_71 : f32 to vector<16x32xf32>
    %209 = arith.addf %208, %207 : vector<16x32xf32>
    %210 = arith.mulf %199, %209 : vector<16x32xf32>
    %211 = arith.truncf %210 : vector<16x32xf32> to vector<16x32xbf16>
    %c0_72 = arith.constant 0 : index
    %c0_73 = arith.constant 0 : index
    %c0_74 = arith.constant 0 : index
    %212 = vector.load %arg11[%c0_72, %c0_73, %c0_74] : memref<2x32x32xbf16, #tpu.memory_space<vmem>>, vector<1x32x32xbf16>
    %213 = vector.shape_cast %212 : vector<1x32x32xbf16> to vector<32x32xbf16>
    %cst_75 = arith.constant dense<0.000000e+00> : vector<16x32xf32>
    %214 = tpu.matmul %211, %213, %cst_75 {dimension_numbers = #tpu.dot_dimension_numbers<[1], [0], [0], [1], [0, 0, 1, 1], [], []>} : vector<16x32xbf16>, vector<32x32xbf16>, vector<16x32xf32> -> vector<16x32xf32>
    %c0_76 = arith.constant 0 : index
    %c0_77 = arith.constant 0 : index
    %c0_78 = arith.constant 0 : index
    %215 = vector.load %arg12[%c0_76, %c0_77, %c0_78] : memref<2x1x32xf32, #tpu.memory_space<vmem>>, vector<1x1x32xf32>
    %216 = vector.shape_cast %215 : vector<1x1x32xf32> to vector<1x32xf32>
    %217 = vector.broadcast %216 : vector<1x32xf32> to vector<16x32xf32>
    %218 = arith.addf %214, %217 : vector<16x32xf32>
    %219 = arith.addf %163, %218 : vector<16x32xf32>
    %c1 = arith.constant 1 : index
    %c0_79 = arith.constant 0 : index
    %c0_80 = arith.constant 0 : index
    %220 = vector.load %arg1[%c1, %c0_79, %c0_80] : memref<2x1x32xf32, #tpu.memory_space<vmem>>, vector<1x1x32xf32>
    %221 = vector.shape_cast %220 : vector<1x1x32xf32> to vector<1x32xf32>
    %c1_81 = arith.constant 1 : index
    %c0_82 = arith.constant 0 : index
    %c0_83 = arith.constant 0 : index
    %222 = vector.load %arg2[%c1_81, %c0_82, %c0_83] : memref<2x1x32xf32, #tpu.memory_space<vmem>>, vector<1x1x32xf32>
    %223 = vector.shape_cast %222 : vector<1x1x32xf32> to vector<1x32xf32>
    %cst_84 = arith.constant dense<0.000000e+00> : vector<16xf32>
    %224 = vector.multi_reduction <add>, %219, %cst_84 [1] : vector<16x32xf32> to vector<16xf32>
    %225 = vector.shape_cast %224 : vector<16xf32> to vector<16x1xf32>
    %cst_85 = arith.constant 3.200000e+01 : f32
    %226 = vector.broadcast %cst_85 : f32 to vector<16x1xf32>
    %227 = arith.divf %225, %226 : vector<16x1xf32>
    %228 = vector.broadcast %227 : vector<16x1xf32> to vector<16x32xf32>
    %229 = arith.subf %219, %228 : vector<16x32xf32>
    %230 = arith.mulf %229, %229 : vector<16x32xf32>
    %cst_86 = arith.constant dense<0.000000e+00> : vector<16xf32>
    %231 = vector.multi_reduction <add>, %230, %cst_86 [1] : vector<16x32xf32> to vector<16xf32>
    %232 = vector.shape_cast %231 : vector<16xf32> to vector<16x1xf32>
    %cst_87 = arith.constant 3.200000e+01 : f32
    %233 = vector.broadcast %cst_87 : f32 to vector<16x1xf32>
    %234 = arith.divf %232, %233 : vector<16x1xf32>
    %235 = vector.broadcast %227 : vector<16x1xf32> to vector<16x32xf32>
    %236 = arith.subf %219, %235 : vector<16x32xf32>
    %cst_88 = arith.constant 9.99999974E-6 : f32
    %237 = vector.broadcast %cst_88 : f32 to vector<16x1xf32>
    %238 = arith.addf %234, %237 : vector<16x1xf32>
    %239 = math.rsqrt %238 : vector<16x1xf32>
    %240 = vector.broadcast %239 : vector<16x1xf32> to vector<16x32xf32>
    %241 = arith.mulf %236, %240 : vector<16x32xf32>
    %242 = vector.broadcast %221 : vector<1x32xf32> to vector<16x32xf32>
    %243 = arith.mulf %241, %242 : vector<16x32xf32>
    %244 = vector.broadcast %223 : vector<1x32xf32> to vector<16x32xf32>
    %245 = arith.addf %243, %244 : vector<16x32xf32>
    %246 = arith.truncf %245 : vector<16x32xf32> to vector<16x32xbf16>
    %c1_89 = arith.constant 1 : index
    %c0_90 = arith.constant 0 : index
    %c0_91 = arith.constant 0 : index
    %247 = vector.load %arg3[%c1_89, %c0_90, %c0_91] : memref<2x32x96xbf16, #tpu.memory_space<vmem>>, vector<1x32x96xbf16>
    %248 = vector.shape_cast %247 : vector<1x32x96xbf16> to vector<32x96xbf16>
    %cst_92 = arith.constant dense<0.000000e+00> : vector<16x96xf32>
    %249 = tpu.matmul %246, %248, %cst_92 {dimension_numbers = #tpu.dot_dimension_numbers<[1], [0], [0], [1], [0, 0, 1, 1], [], []>} : vector<16x32xbf16>, vector<32x96xbf16>, vector<16x96xf32> -> vector<16x96xf32>
    %c1_93 = arith.constant 1 : index
    %c0_94 = arith.constant 0 : index
    %c0_95 = arith.constant 0 : index
    %250 = vector.load %arg4[%c1_93, %c0_94, %c0_95] : memref<2x1x96xf32, #tpu.memory_space<vmem>>, vector<1x1x96xf32>
    %251 = vector.shape_cast %250 : vector<1x1x96xf32> to vector<1x96xf32>
    %252 = vector.broadcast %251 : vector<1x96xf32> to vector<16x96xf32>
    %253 = arith.addf %249, %252 : vector<16x96xf32>
    %254 = vector.shape_cast %253 : vector<16x96xf32> to vector<2x8x96xf32>
    %c1_96 = arith.constant 1 : index
    %c0_97 = arith.constant 0 : index
    %c0_98 = arith.constant 0 : index
    %c0_99 = arith.constant 0 : index
    %255 = vector.load %arg5[%c1_96, %c0_97, %c0_98, %c0_99] : memref<2x4x8x32xbf16, #tpu.memory_space<vmem>>, vector<1x4x8x32xbf16>
    %256 = vector.shape_cast %255 : vector<1x4x8x32xbf16> to vector<4x8x32xbf16>
    %cst_100 = arith.constant 0.000000e+00 : f32
    %257 = vector.broadcast %cst_100 : f32 to vector<16x32xf32>
    %258 = vector.extract_strided_slice %254 {offsets = [0, 0, 0], sizes = [2, 8, 8], strides = [1, 1, 1]} : vector<2x8x96xf32> to vector<2x8x8xf32>
    %259 = arith.truncf %258 : vector<2x8x8xf32> to vector<2x8x8xbf16>
    %260 = vector.extract_strided_slice %254 {offsets = [0, 0, 32], sizes = [2, 8, 8], strides = [1, 1, 1]} : vector<2x8x96xf32> to vector<2x8x8xf32>
    %261 = arith.truncf %260 : vector<2x8x8xf32> to vector<2x8x8xbf16>
    %262 = vector.extract_strided_slice %254 {offsets = [0, 0, 64], sizes = [2, 8, 8], strides = [1, 1, 1]} : vector<2x8x96xf32> to vector<2x8x8xf32>
    %263 = arith.truncf %262 : vector<2x8x8xf32> to vector<2x8x8xbf16>
    "tpu.trace_start"() <{level = 10 : i32, message = "bqd,bkd->bqk"}> : () -> ()
    %cst_101 = arith.constant dense<0.000000e+00> : vector<2x8x8xf32>
    %264 = tpu.matmul %259, %261, %cst_101 {dimension_numbers = #tpu.dot_dimension_numbers<[2], [2], [1], [1], [0, 0, 0, 1, 1, 1], [0], [0]>} : vector<2x8x8xbf16>, vector<2x8x8xbf16>, vector<2x8x8xf32> -> vector<2x8x8xf32>
    %cst_102 = arith.constant -3.40282347E+38 : f32
    "tpu.trace_stop"() : () -> ()
    %265 = vector.shape_cast %4 : vector<1x8x8xi1> to vector<1x8x8xi1>
    %266 = vector.broadcast %265 : vector<1x8x8xi1> to vector<2x8x8xi1>
    %267 = vector.broadcast %cst_102 : f32 to vector<2x8x8xf32>
    %268 = arith.select %266, %264, %267 : vector<2x8x8xi1>, vector<2x8x8xf32>
    %cst_103 = arith.constant dense<0xFF800000> : vector<2x8xf32>
    %269 = vector.multi_reduction <maximumf>, %268, %cst_103 [2] : vector<2x8x8xf32> to vector<2x8xf32>
    %270 = vector.shape_cast %269 : vector<2x8xf32> to vector<2x8x1xf32>
    %271 = vector.broadcast %270 : vector<2x8x1xf32> to vector<2x8x8xf32>
    %272 = arith.subf %268, %271 : vector<2x8x8xf32>
    %273 = math.exp %272 : vector<2x8x8xf32>
    %cst_104 = arith.constant dense<0.000000e+00> : vector<2x8xf32>
    %274 = vector.multi_reduction <add>, %273, %cst_104 [2] : vector<2x8x8xf32> to vector<2x8xf32>
    %275 = vector.shape_cast %274 : vector<2x8xf32> to vector<2x8x1xf32>
    %276 = tpu.reciprocal %275 {approx = true} : vector<2x8x1xf32> -> vector<2x8x1xf32>
    %277 = vector.broadcast %276 : vector<2x8x1xf32> to vector<2x8x8xf32>
    %278 = arith.mulf %273, %277 : vector<2x8x8xf32>
    %279 = arith.truncf %278 : vector<2x8x8xf32> to vector<2x8x8xbf16>
    "tpu.trace_start"() <{level = 10 : i32, message = "bqk,bkd->bqd"}> : () -> ()
    %cst_105 = arith.constant dense<0.000000e+00> : vector<2x8x8xf32>
    %280 = tpu.matmul %279, %263, %cst_105 {dimension_numbers = #tpu.dot_dimension_numbers<[2], [1], [1], [2], [0, 0, 0, 1, 1, 2], [0], [0]>} : vector<2x8x8xbf16>, vector<2x8x8xbf16>, vector<2x8x8xf32> -> vector<2x8x8xf32>
    "tpu.trace_stop"() : () -> ()
    %281 = vector.shape_cast %280 : vector<2x8x8xf32> to vector<16x8xf32>
    %282 = arith.truncf %281 : vector<16x8xf32> to vector<16x8xbf16>
    %283 = vector.extract_strided_slice %256 {offsets = [0, 0, 0], sizes = [1, 8, 32], strides = [1, 1, 1]} : vector<4x8x32xbf16> to vector<1x8x32xbf16>
    %284 = vector.shape_cast %283 : vector<1x8x32xbf16> to vector<8x32xbf16>
    %cst_106 = arith.constant dense<0.000000e+00> : vector<16x32xf32>
    %285 = tpu.matmul %282, %284, %cst_106 {dimension_numbers = #tpu.dot_dimension_numbers<[1], [0], [0], [1], [0, 0, 1, 1], [], []>} : vector<16x8xbf16>, vector<8x32xbf16>, vector<16x32xf32> -> vector<16x32xf32>
    %286 = arith.addf %257, %285 : vector<16x32xf32>
    %287 = vector.extract_strided_slice %254 {offsets = [0, 0, 8], sizes = [2, 8, 8], strides = [1, 1, 1]} : vector<2x8x96xf32> to vector<2x8x8xf32>
    %288 = arith.truncf %287 : vector<2x8x8xf32> to vector<2x8x8xbf16>
    %289 = vector.extract_strided_slice %254 {offsets = [0, 0, 40], sizes = [2, 8, 8], strides = [1, 1, 1]} : vector<2x8x96xf32> to vector<2x8x8xf32>
    %290 = arith.truncf %289 : vector<2x8x8xf32> to vector<2x8x8xbf16>
    %291 = vector.extract_strided_slice %254 {offsets = [0, 0, 72], sizes = [2, 8, 8], strides = [1, 1, 1]} : vector<2x8x96xf32> to vector<2x8x8xf32>
    %292 = arith.truncf %291 : vector<2x8x8xf32> to vector<2x8x8xbf16>
    "tpu.trace_start"() <{level = 10 : i32, message = "bqd,bkd->bqk"}> : () -> ()
    %cst_107 = arith.constant dense<0.000000e+00> : vector<2x8x8xf32>
    %293 = tpu.matmul %288, %290, %cst_107 {dimension_numbers = #tpu.dot_dimension_numbers<[2], [2], [1], [1], [0, 0, 0, 1, 1, 1], [0], [0]>} : vector<2x8x8xbf16>, vector<2x8x8xbf16>, vector<2x8x8xf32> -> vector<2x8x8xf32>
    %cst_108 = arith.constant -3.40282347E+38 : f32
    "tpu.trace_stop"() : () -> ()
    %294 = vector.shape_cast %4 : vector<1x8x8xi1> to vector<1x8x8xi1>
    %295 = vector.broadcast %294 : vector<1x8x8xi1> to vector<2x8x8xi1>
    %296 = vector.broadcast %cst_108 : f32 to vector<2x8x8xf32>
    %297 = arith.select %295, %293, %296 : vector<2x8x8xi1>, vector<2x8x8xf32>
    %cst_109 = arith.constant dense<0xFF800000> : vector<2x8xf32>
    %298 = vector.multi_reduction <maximumf>, %297, %cst_109 [2] : vector<2x8x8xf32> to vector<2x8xf32>
    %299 = vector.shape_cast %298 : vector<2x8xf32> to vector<2x8x1xf32>
    %300 = vector.broadcast %299 : vector<2x8x1xf32> to vector<2x8x8xf32>
    %301 = arith.subf %297, %300 : vector<2x8x8xf32>
    %302 = math.exp %301 : vector<2x8x8xf32>
    %cst_110 = arith.constant dense<0.000000e+00> : vector<2x8xf32>
    %303 = vector.multi_reduction <add>, %302, %cst_110 [2] : vector<2x8x8xf32> to vector<2x8xf32>
    %304 = vector.shape_cast %303 : vector<2x8xf32> to vector<2x8x1xf32>
    %305 = tpu.reciprocal %304 {approx = true} : vector<2x8x1xf32> -> vector<2x8x1xf32>
    %306 = vector.broadcast %305 : vector<2x8x1xf32> to vector<2x8x8xf32>
    %307 = arith.mulf %302, %306 : vector<2x8x8xf32>
    %308 = arith.truncf %307 : vector<2x8x8xf32> to vector<2x8x8xbf16>
    "tpu.trace_start"() <{level = 10 : i32, message = "bqk,bkd->bqd"}> : () -> ()
    %cst_111 = arith.constant dense<0.000000e+00> : vector<2x8x8xf32>
    %309 = tpu.matmul %308, %292, %cst_111 {dimension_numbers = #tpu.dot_dimension_numbers<[2], [1], [1], [2], [0, 0, 0, 1, 1, 2], [0], [0]>} : vector<2x8x8xbf16>, vector<2x8x8xbf16>, vector<2x8x8xf32> -> vector<2x8x8xf32>
    "tpu.trace_stop"() : () -> ()
    %310 = vector.shape_cast %309 : vector<2x8x8xf32> to vector<16x8xf32>
    %311 = arith.truncf %310 : vector<16x8xf32> to vector<16x8xbf16>
    %312 = vector.extract_strided_slice %256 {offsets = [1, 0, 0], sizes = [1, 8, 32], strides = [1, 1, 1]} : vector<4x8x32xbf16> to vector<1x8x32xbf16>
    %313 = vector.shape_cast %312 : vector<1x8x32xbf16> to vector<8x32xbf16>
    %cst_112 = arith.constant dense<0.000000e+00> : vector<16x32xf32>
    %314 = tpu.matmul %311, %313, %cst_112 {dimension_numbers = #tpu.dot_dimension_numbers<[1], [0], [0], [1], [0, 0, 1, 1], [], []>} : vector<16x8xbf16>, vector<8x32xbf16>, vector<16x32xf32> -> vector<16x32xf32>
    %315 = arith.addf %286, %314 : vector<16x32xf32>
    %316 = vector.extract_strided_slice %254 {offsets = [0, 0, 16], sizes = [2, 8, 8], strides = [1, 1, 1]} : vector<2x8x96xf32> to vector<2x8x8xf32>
    %317 = arith.truncf %316 : vector<2x8x8xf32> to vector<2x8x8xbf16>
    %318 = vector.extract_strided_slice %254 {offsets = [0, 0, 48], sizes = [2, 8, 8], strides = [1, 1, 1]} : vector<2x8x96xf32> to vector<2x8x8xf32>
    %319 = arith.truncf %318 : vector<2x8x8xf32> to vector<2x8x8xbf16>
    %320 = vector.extract_strided_slice %254 {offsets = [0, 0, 80], sizes = [2, 8, 8], strides = [1, 1, 1]} : vector<2x8x96xf32> to vector<2x8x8xf32>
    %321 = arith.truncf %320 : vector<2x8x8xf32> to vector<2x8x8xbf16>
    "tpu.trace_start"() <{level = 10 : i32, message = "bqd,bkd->bqk"}> : () -> ()
    %cst_113 = arith.constant dense<0.000000e+00> : vector<2x8x8xf32>
    %322 = tpu.matmul %317, %319, %cst_113 {dimension_numbers = #tpu.dot_dimension_numbers<[2], [2], [1], [1], [0, 0, 0, 1, 1, 1], [0], [0]>} : vector<2x8x8xbf16>, vector<2x8x8xbf16>, vector<2x8x8xf32> -> vector<2x8x8xf32>
    %cst_114 = arith.constant -3.40282347E+38 : f32
    "tpu.trace_stop"() : () -> ()
    %323 = vector.shape_cast %4 : vector<1x8x8xi1> to vector<1x8x8xi1>
    %324 = vector.broadcast %323 : vector<1x8x8xi1> to vector<2x8x8xi1>
    %325 = vector.broadcast %cst_114 : f32 to vector<2x8x8xf32>
    %326 = arith.select %324, %322, %325 : vector<2x8x8xi1>, vector<2x8x8xf32>
    %cst_115 = arith.constant dense<0xFF800000> : vector<2x8xf32>
    %327 = vector.multi_reduction <maximumf>, %326, %cst_115 [2] : vector<2x8x8xf32> to vector<2x8xf32>
    %328 = vector.shape_cast %327 : vector<2x8xf32> to vector<2x8x1xf32>
    %329 = vector.broadcast %328 : vector<2x8x1xf32> to vector<2x8x8xf32>
    %330 = arith.subf %326, %329 : vector<2x8x8xf32>
    %331 = math.exp %330 : vector<2x8x8xf32>
    %cst_116 = arith.constant dense<0.000000e+00> : vector<2x8xf32>
    %332 = vector.multi_reduction <add>, %331, %cst_116 [2] : vector<2x8x8xf32> to vector<2x8xf32>
    %333 = vector.shape_cast %332 : vector<2x8xf32> to vector<2x8x1xf32>
    %334 = tpu.reciprocal %333 {approx = true} : vector<2x8x1xf32> -> vector<2x8x1xf32>
    %335 = vector.broadcast %334 : vector<2x8x1xf32> to vector<2x8x8xf32>
    %336 = arith.mulf %331, %335 : vector<2x8x8xf32>
    %337 = arith.truncf %336 : vector<2x8x8xf32> to vector<2x8x8xbf16>
    "tpu.trace_start"() <{level = 10 : i32, message = "bqk,bkd->bqd"}> : () -> ()
    %cst_117 = arith.constant dense<0.000000e+00> : vector<2x8x8xf32>
    %338 = tpu.matmul %337, %321, %cst_117 {dimension_numbers = #tpu.dot_dimension_numbers<[2], [1], [1], [2], [0, 0, 0, 1, 1, 2], [0], [0]>} : vector<2x8x8xbf16>, vector<2x8x8xbf16>, vector<2x8x8xf32> -> vector<2x8x8xf32>
    "tpu.trace_stop"() : () -> ()
    %339 = vector.shape_cast %338 : vector<2x8x8xf32> to vector<16x8xf32>
    %340 = arith.truncf %339 : vector<16x8xf32> to vector<16x8xbf16>
    %341 = vector.extract_strided_slice %256 {offsets = [2, 0, 0], sizes = [1, 8, 32], strides = [1, 1, 1]} : vector<4x8x32xbf16> to vector<1x8x32xbf16>
    %342 = vector.shape_cast %341 : vector<1x8x32xbf16> to vector<8x32xbf16>
    %cst_118 = arith.constant dense<0.000000e+00> : vector<16x32xf32>
    %343 = tpu.matmul %340, %342, %cst_118 {dimension_numbers = #tpu.dot_dimension_numbers<[1], [0], [0], [1], [0, 0, 1, 1], [], []>} : vector<16x8xbf16>, vector<8x32xbf16>, vector<16x32xf32> -> vector<16x32xf32>
    %344 = arith.addf %315, %343 : vector<16x32xf32>
    %345 = vector.extract_strided_slice %254 {offsets = [0, 0, 24], sizes = [2, 8, 8], strides = [1, 1, 1]} : vector<2x8x96xf32> to vector<2x8x8xf32>
    %346 = arith.truncf %345 : vector<2x8x8xf32> to vector<2x8x8xbf16>
    %347 = vector.extract_strided_slice %254 {offsets = [0, 0, 56], sizes = [2, 8, 8], strides = [1, 1, 1]} : vector<2x8x96xf32> to vector<2x8x8xf32>
    %348 = arith.truncf %347 : vector<2x8x8xf32> to vector<2x8x8xbf16>
    %349 = vector.extract_strided_slice %254 {offsets = [0, 0, 88], sizes = [2, 8, 8], strides = [1, 1, 1]} : vector<2x8x96xf32> to vector<2x8x8xf32>
    %350 = arith.truncf %349 : vector<2x8x8xf32> to vector<2x8x8xbf16>
    "tpu.trace_start"() <{level = 10 : i32, message = "bqd,bkd->bqk"}> : () -> ()
    %cst_119 = arith.constant dense<0.000000e+00> : vector<2x8x8xf32>
    %351 = tpu.matmul %346, %348, %cst_119 {dimension_numbers = #tpu.dot_dimension_numbers<[2], [2], [1], [1], [0, 0, 0, 1, 1, 1], [0], [0]>} : vector<2x8x8xbf16>, vector<2x8x8xbf16>, vector<2x8x8xf32> -> vector<2x8x8xf32>
    %cst_120 = arith.constant -3.40282347E+38 : f32
    "tpu.trace_stop"() : () -> ()
    %352 = vector.shape_cast %4 : vector<1x8x8xi1> to vector<1x8x8xi1>
    %353 = vector.broadcast %352 : vector<1x8x8xi1> to vector<2x8x8xi1>
    %354 = vector.broadcast %cst_120 : f32 to vector<2x8x8xf32>
    %355 = arith.select %353, %351, %354 : vector<2x8x8xi1>, vector<2x8x8xf32>
    %cst_121 = arith.constant dense<0xFF800000> : vector<2x8xf32>
    %356 = vector.multi_reduction <maximumf>, %355, %cst_121 [2] : vector<2x8x8xf32> to vector<2x8xf32>
    %357 = vector.shape_cast %356 : vector<2x8xf32> to vector<2x8x1xf32>
    %358 = vector.broadcast %357 : vector<2x8x1xf32> to vector<2x8x8xf32>
    %359 = arith.subf %355, %358 : vector<2x8x8xf32>
    %360 = math.exp %359 : vector<2x8x8xf32>
    %cst_122 = arith.constant dense<0.000000e+00> : vector<2x8xf32>
    %361 = vector.multi_reduction <add>, %360, %cst_122 [2] : vector<2x8x8xf32> to vector<2x8xf32>
    %362 = vector.shape_cast %361 : vector<2x8xf32> to vector<2x8x1xf32>
    %363 = tpu.reciprocal %362 {approx = true} : vector<2x8x1xf32> -> vector<2x8x1xf32>
    %364 = vector.broadcast %363 : vector<2x8x1xf32> to vector<2x8x8xf32>
    %365 = arith.mulf %360, %364 : vector<2x8x8xf32>
    %366 = arith.truncf %365 : vector<2x8x8xf32> to vector<2x8x8xbf16>
    "tpu.trace_start"() <{level = 10 : i32, message = "bqk,bkd->bqd"}> : () -> ()
    %cst_123 = arith.constant dense<0.000000e+00> : vector<2x8x8xf32>
    %367 = tpu.matmul %366, %350, %cst_123 {dimension_numbers = #tpu.dot_dimension_numbers<[2], [1], [1], [2], [0, 0, 0, 1, 1, 2], [0], [0]>} : vector<2x8x8xbf16>, vector<2x8x8xbf16>, vector<2x8x8xf32> -> vector<2x8x8xf32>
    "tpu.trace_stop"() : () -> ()
    %368 = vector.shape_cast %367 : vector<2x8x8xf32> to vector<16x8xf32>
    %369 = arith.truncf %368 : vector<16x8xf32> to vector<16x8xbf16>
    %370 = vector.extract_strided_slice %256 {offsets = [3, 0, 0], sizes = [1, 8, 32], strides = [1, 1, 1]} : vector<4x8x32xbf16> to vector<1x8x32xbf16>
    %371 = vector.shape_cast %370 : vector<1x8x32xbf16> to vector<8x32xbf16>
    %cst_124 = arith.constant dense<0.000000e+00> : vector<16x32xf32>
    %372 = tpu.matmul %369, %371, %cst_124 {dimension_numbers = #tpu.dot_dimension_numbers<[1], [0], [0], [1], [0, 0, 1, 1], [], []>} : vector<16x8xbf16>, vector<8x32xbf16>, vector<16x32xf32> -> vector<16x32xf32>
    %373 = arith.addf %344, %372 : vector<16x32xf32>
    %374 = arith.addf %219, %373 : vector<16x32xf32>
    %c1_125 = arith.constant 1 : index
    %c0_126 = arith.constant 0 : index
    %c0_127 = arith.constant 0 : index
    %375 = vector.load %arg6[%c1_125, %c0_126, %c0_127] : memref<2x1x32xf32, #tpu.memory_space<vmem>>, vector<1x1x32xf32>
    %376 = vector.shape_cast %375 : vector<1x1x32xf32> to vector<1x32xf32>
    %377 = vector.broadcast %376 : vector<1x32xf32> to vector<16x32xf32>
    %378 = arith.addf %374, %377 : vector<16x32xf32>
    %c1_128 = arith.constant 1 : index
    %c0_129 = arith.constant 0 : index
    %c0_130 = arith.constant 0 : index
    %379 = vector.load %arg7[%c1_128, %c0_129, %c0_130] : memref<2x1x32xf32, #tpu.memory_space<vmem>>, vector<1x1x32xf32>
    %380 = vector.shape_cast %379 : vector<1x1x32xf32> to vector<1x32xf32>
    %c1_131 = arith.constant 1 : index
    %c0_132 = arith.constant 0 : index
    %c0_133 = arith.constant 0 : index
    %381 = vector.load %arg8[%c1_131, %c0_132, %c0_133] : memref<2x1x32xf32, #tpu.memory_space<vmem>>, vector<1x1x32xf32>
    %382 = vector.shape_cast %381 : vector<1x1x32xf32> to vector<1x32xf32>
    %cst_134 = arith.constant dense<0.000000e+00> : vector<16xf32>
    %383 = vector.multi_reduction <add>, %378, %cst_134 [1] : vector<16x32xf32> to vector<16xf32>
    %384 = vector.shape_cast %383 : vector<16xf32> to vector<16x1xf32>
    %cst_135 = arith.constant 3.200000e+01 : f32
    %385 = vector.broadcast %cst_135 : f32 to vector<16x1xf32>
    %386 = arith.divf %384, %385 : vector<16x1xf32>
    %387 = vector.broadcast %386 : vector<16x1xf32> to vector<16x32xf32>
    %388 = arith.subf %378, %387 : vector<16x32xf32>
    %389 = arith.mulf %388, %388 : vector<16x32xf32>
    %cst_136 = arith.constant dense<0.000000e+00> : vector<16xf32>
    %390 = vector.multi_reduction <add>, %389, %cst_136 [1] : vector<16x32xf32> to vector<16xf32>
    %391 = vector.shape_cast %390 : vector<16xf32> to vector<16x1xf32>
    %cst_137 = arith.constant 3.200000e+01 : f32
    %392 = vector.broadcast %cst_137 : f32 to vector<16x1xf32>
    %393 = arith.divf %391, %392 : vector<16x1xf32>
    %394 = vector.broadcast %386 : vector<16x1xf32> to vector<16x32xf32>
    %395 = arith.subf %378, %394 : vector<16x32xf32>
    %cst_138 = arith.constant 9.99999974E-6 : f32
    %396 = vector.broadcast %cst_138 : f32 to vector<16x1xf32>
    %397 = arith.addf %393, %396 : vector<16x1xf32>
    %398 = math.rsqrt %397 : vector<16x1xf32>
    %399 = vector.broadcast %398 : vector<16x1xf32> to vector<16x32xf32>
    %400 = arith.mulf %395, %399 : vector<16x32xf32>
    %401 = vector.broadcast %380 : vector<1x32xf32> to vector<16x32xf32>
    %402 = arith.mulf %400, %401 : vector<16x32xf32>
    %403 = vector.broadcast %382 : vector<1x32xf32> to vector<16x32xf32>
    %404 = arith.addf %402, %403 : vector<16x32xf32>
    %405 = arith.truncf %404 : vector<16x32xf32> to vector<16x32xbf16>
    %c1_139 = arith.constant 1 : index
    %c0_140 = arith.constant 0 : index
    %c0_141 = arith.constant 0 : index
    %406 = vector.load %arg9[%c1_139, %c0_140, %c0_141] : memref<2x32x32xbf16, #tpu.memory_space<vmem>>, vector<1x32x32xbf16>
    %407 = vector.shape_cast %406 : vector<1x32x32xbf16> to vector<32x32xbf16>
    %cst_142 = arith.constant dense<0.000000e+00> : vector<16x32xf32>
    %408 = tpu.matmul %405, %407, %cst_142 {dimension_numbers = #tpu.dot_dimension_numbers<[1], [0], [0], [1], [0, 0, 1, 1], [], []>} : vector<16x32xbf16>, vector<32x32xbf16>, vector<16x32xf32> -> vector<16x32xf32>
    %c1_143 = arith.constant 1 : index
    %c0_144 = arith.constant 0 : index
    %c0_145 = arith.constant 0 : index
    %409 = vector.load %arg10[%c1_143, %c0_144, %c0_145] : memref<2x1x32xf32, #tpu.memory_space<vmem>>, vector<1x1x32xf32>
    %410 = vector.shape_cast %409 : vector<1x1x32xf32> to vector<1x32xf32>
    %411 = vector.broadcast %410 : vector<1x32xf32> to vector<16x32xf32>
    %412 = arith.addf %408, %411 : vector<16x32xf32>
    %cst_146 = arith.constant 5.000000e-01 : f32
    %413 = vector.broadcast %cst_146 : f32 to vector<16x32xf32>
    %414 = arith.mulf %413, %412 : vector<16x32xf32>
    %cst_147 = arith.constant 4.471500e-02 : f32
    %415 = vector.broadcast %cst_147 : f32 to vector<16x32xf32>
    %416 = arith.mulf %415, %412 : vector<16x32xf32>
    %417 = arith.mulf %416, %412 : vector<16x32xf32>
    %418 = arith.mulf %417, %412 : vector<16x32xf32>
    %419 = arith.addf %412, %418 : vector<16x32xf32>
    %cst_148 = arith.constant 0.797884583 : f32
    %420 = vector.broadcast %cst_148 : f32 to vector<16x32xf32>
    %421 = arith.mulf %420, %419 : vector<16x32xf32>
    %422 = math.tanh %421 : vector<16x32xf32>
    %cst_149 = arith.constant 1.000000e+00 : f32
    %423 = vector.broadcast %cst_149 : f32 to vector<16x32xf32>
    %424 = arith.addf %423, %422 : vector<16x32xf32>
    %425 = arith.mulf %414, %424 : vector<16x32xf32>
    %426 = arith.truncf %425 : vector<16x32xf32> to vector<16x32xbf16>
    %c1_150 = arith.constant 1 : index
    %c0_151 = arith.constant 0 : index
    %c0_152 = arith.constant 0 : index
    %427 = vector.load %arg11[%c1_150, %c0_151, %c0_152] : memref<2x32x32xbf16, #tpu.memory_space<vmem>>, vector<1x32x32xbf16>
    %428 = vector.shape_cast %427 : vector<1x32x32xbf16> to vector<32x32xbf16>
    %cst_153 = arith.constant dense<0.000000e+00> : vector<16x32xf32>
    %429 = tpu.matmul %426, %428, %cst_153 {dimension_numbers = #tpu.dot_dimension_numbers<[1], [0], [0], [1], [0, 0, 1, 1], [], []>} : vector<16x32xbf16>, vector<32x32xbf16>, vector<16x32xf32> -> vector<16x32xf32>
    %c1_154 = arith.constant 1 : index
    %c0_155 = arith.constant 0 : index
    %c0_156 = arith.constant 0 : index
    %430 = vector.load %arg12[%c1_154, %c0_155, %c0_156] : memref<2x1x32xf32, #tpu.memory_space<vmem>>, vector<1x1x32xf32>
    %431 = vector.shape_cast %430 : vector<1x1x32xf32> to vector<1x32xf32>
    %432 = vector.broadcast %431 : vector<1x32xf32> to vector<16x32xf32>
    %433 = arith.addf %429, %432 : vector<16x32xf32>
    %434 = arith.addf %378, %433 : vector<16x32xf32>
    %c0_157 = arith.constant 0 : index
    %c0_158 = arith.constant 0 : index
    %435 = vector.load %arg13[%c0_157, %c0_158] : memref<1x32xf32, #tpu.memory_space<vmem>>, vector<1x32xf32>
    %c0_159 = arith.constant 0 : index
    %c0_160 = arith.constant 0 : index
    %436 = vector.load %arg14[%c0_159, %c0_160] : memref<1x32xf32, #tpu.memory_space<vmem>>, vector<1x32xf32>
    %cst_161 = arith.constant dense<0.000000e+00> : vector<16xf32>
    %437 = vector.multi_reduction <add>, %434, %cst_161 [1] : vector<16x32xf32> to vector<16xf32>
    %438 = vector.shape_cast %437 : vector<16xf32> to vector<16x1xf32>
    %cst_162 = arith.constant 3.200000e+01 : f32
    %439 = vector.broadcast %cst_162 : f32 to vector<16x1xf32>
    %440 = arith.divf %438, %439 : vector<16x1xf32>
    %441 = vector.broadcast %440 : vector<16x1xf32> to vector<16x32xf32>
    %442 = arith.subf %434, %441 : vector<16x32xf32>
    %443 = arith.mulf %442, %442 : vector<16x32xf32>
    %cst_163 = arith.constant dense<0.000000e+00> : vector<16xf32>
    %444 = vector.multi_reduction <add>, %443, %cst_163 [1] : vector<16x32xf32> to vector<16xf32>
    %445 = vector.shape_cast %444 : vector<16xf32> to vector<16x1xf32>
    %cst_164 = arith.constant 3.200000e+01 : f32
    %446 = vector.broadcast %cst_164 : f32 to vector<16x1xf32>
    %447 = arith.divf %445, %446 : vector<16x1xf32>
    %448 = vector.broadcast %440 : vector<16x1xf32> to vector<16x32xf32>
    %449 = arith.subf %434, %448 : vector<16x32xf32>
    %cst_165 = arith.constant 9.99999974E-6 : f32
    %450 = vector.broadcast %cst_165 : f32 to vector<16x1xf32>
    %451 = arith.addf %447, %450 : vector<16x1xf32>
    %452 = math.rsqrt %451 : vector<16x1xf32>
    %453 = vector.broadcast %452 : vector<16x1xf32> to vector<16x32xf32>
    %454 = arith.mulf %449, %453 : vector<16x32xf32>
    %455 = vector.broadcast %435 : vector<1x32xf32> to vector<16x32xf32>
    %456 = arith.mulf %454, %455 : vector<16x32xf32>
    %457 = vector.broadcast %436 : vector<1x32xf32> to vector<16x32xf32>
    %458 = arith.addf %456, %457 : vector<16x32xf32>
    %459 = arith.truncf %458 : vector<16x32xf32> to vector<16x32xbf16>
    %c0_166 = arith.constant 0 : index
    %c0_167 = arith.constant 0 : index
    %460 = vector.load %arg15[%c0_166, %c0_167] : memref<32x64xbf16, #tpu.memory_space<vmem>>, vector<32x64xbf16>
    %cst_168 = arith.constant dense<0.000000e+00> : vector<16x64xf32>
    %461 = tpu.matmul %459, %460, %cst_168 {dimension_numbers = #tpu.dot_dimension_numbers<[1], [0], [0], [1], [0, 0, 1, 1], [], []>} : vector<16x32xbf16>, vector<32x64xbf16>, vector<16x64xf32> -> vector<16x64xf32>
    %c0_169 = arith.constant 0 : index
    %c0_170 = arith.constant 0 : index
    %462 = vector.load %arg16[%c0_169, %c0_170] : memref<16x64xf32, #tpu.memory_space<vmem>>, vector<16x64xf32>
    tpu.vector_store %arg16[%c0_169, %c0_170], %461 {strides = array<i32>} : memref<16x64xf32, #tpu.memory_space<vmem>>, vector<16x64xf32>,
    return
  }
}

</mosaic_0001>

<llo_original>
// kernel: my_transformer_forward.1
$region0: #{my_transformer_forward.1}
  #allocation0 [shape = 'u32[]', space=smem, size = 0x4, offset = 0x4, fixed_abs, tag = 'smem constant byte address 0x4 - core index']
  #allocation1 [shape = 'u32[72,128]{1,0:T(1,128)}', space=vmem, size = 0x9000, scoped, tag = 'internal scratch']
  %s0 = inlined_call_operand.vmem [shape: f32[16,32], index: 0, kind: input, shape index: {}]
  %s1 = inlined_call_operand.vmem [shape: f32[2,1,32], index: 1, kind: input, shape index: {}]
  %s2 = inlined_call_operand.vmem [shape: f32[2,1,32], index: 2, kind: input, shape index: {}]
  %s3 = inlined_call_operand.vmem [shape: bf16[2,32,96], index: 3, kind: input, shape index: {}]
  %s4 = inlined_call_operand.vmem [shape: f32[2,1,96], index: 4, kind: input, shape index: {}]
  %s5 = inlined_call_operand.vmem [shape: bf16[2,4,8,32], index: 5, kind: input, shape index: {}]
  %s6 = inlined_call_operand.vmem [shape: f32[2,1,32], index: 6, kind: input, shape index: {}]
  %s7 = inlined_call_operand.vmem [shape: f32[2,1,32], index: 7, kind: input, shape index: {}]
  %s8 = inlined_call_operand.vmem [shape: f32[2,1,32], index: 8, kind: input, shape index: {}]
  %s9 = inlined_call_operand.vmem [shape: bf16[2,32,32], index: 9, kind: input, shape index: {}]
  %s10 = inlined_call_operand.vmem [shape: f32[2,1,32], index: 10, kind: input, shape index: {}]
  %s11 = inlined_call_operand.vmem [shape: bf16[2,32,32], index: 11, kind: input, shape index: {}]
  %s12 = inlined_call_operand.vmem [shape: f32[2,1,32], index: 12, kind: input, shape index: {}]
  %s13 = inlined_call_operand.vmem [shape: f32[1,32], index: 13, kind: input, shape index: {}]
  %s14 = inlined_call_operand.vmem [shape: f32[1,32], index: 14, kind: input, shape index: {}]
  %s15 = inlined_call_operand.vmem [shape: bf16[32,64], index: 15, kind: input, shape index: {}]
  %s16 = inlined_call_operand.hbm [shape: f32[16,64], index: 16, kind: output, shape index: {}]
  %s17 = sld [smem:[#allocation0]]
  $region74: #{my_transformer_forward.1} parent=0
    _
  %s19 = ssub.s32 1, %s17
  %s20 = scalar_select 0, %s19, %s17
  $region1: #{my_transformer_forward.1} parent=0
    #allocation2 [shape = 'u8[8192]{0}', space=vmem, size = 0x2000, scoped, tag = 'output window, operand 0, single buffered']
    #allocation3 [shape = 's32[1]{0}', space=sflag, size = 0x4, scoped, tag = 'scoped memory for my_transformer_forward.1']
    %21 = vsyncpa [#allocation3], 0
    // Predicated region
    $region2: #{my_transformer_forward.1} parent=1 // pred_check
      _
    $region3: #{my_transformer_forward.1} parent=1 // pred_check_branch
      %23 = sbr.rel (0) target = $region5
    $region4: #{my_transformer_forward.1} parent=1 // pred_region
      _
    $region5: #{my_transformer_forward.1} parent=1 // pred_fallthru
      _
    // Predicated region
    $region6: #{my_transformer_forward.1} parent=1 // pred_check
      _
    $region7: #{my_transformer_forward.1} parent=1 // pred_check_branch
      %25 = sbr.rel (0) target = $region9
    $region8: #{my_transformer_forward.1} parent=1 // pred_region
      _
    $region9: #{my_transformer_forward.1} parent=1 // pred_fallthru
      _
    // Predicated region
    $region10: #{my_transformer_forward.1} parent=1 // pred_check
      _
    $region11: #{my_transformer_forward.1} parent=1 // pred_check_branch
      %27 = sbr.rel (0) target = $region13
    $region12: #{my_transformer_forward.1} parent=1 // pred_region
      _
    $region13: #{my_transformer_forward.1} parent=1 // pred_fallthru
      _
    // Predicated region
    $region14: #{my_transformer_forward.1} parent=1 // pred_check
      _
    $region15: #{my_transformer_forward.1} parent=1 // pred_check_branch
      %29 = sbr.rel (0) target = $region17
    $region16: #{my_transformer_forward.1} parent=1 // pred_region
      _
    $region17: #{my_transformer_forward.1} parent=1 // pred_fallthru
      _
    // Predicated region
    $region18: #{my_transformer_forward.1} parent=1 // pred_check
      _
    $region19: #{my_transformer_forward.1} parent=1 // pred_check_branch
      %31 = sbr.rel (0) target = $region21
    $region20: #{my_transformer_forward.1} parent=1 // pred_region
      _
    $region21: #{my_transformer_forward.1} parent=1 // pred_fallthru
      _
    // Predicated region
    $region22: #{my_transformer_forward.1} parent=1 // pred_check
      _
    $region23: #{my_transformer_forward.1} parent=1 // pred_check_branch
      %33 = sbr.rel (0) target = $region25
    $region24: #{my_transformer_forward.1} parent=1 // pred_region
      _
    $region25: #{my_transformer_forward.1} parent=1 // pred_fallthru
      _
    // Predicated region
    $region26: #{my_transformer_forward.1} parent=1 // pred_check
      _
    $region27: #{my_transformer_forward.1} parent=1 // pred_check_branch
      %35 = sbr.rel (0) target = $region29
    $region28: #{my_transformer_forward.1} parent=1 // pred_region
      _
    $region29: #{my_transformer_forward.1} parent=1 // pred_fallthru
      _
    // Predicated region
    $region30: #{my_transformer_forward.1} parent=1 // pred_check
      _
    $region31: #{my_transformer_forward.1} parent=1 // pred_check_branch
      %37 = sbr.rel (0) target = $region33
    $region32: #{my_transformer_forward.1} parent=1 // pred_region
      _
    $region33: #{my_transformer_forward.1} parent=1 // pred_fallthru
      _
    // Predicated region
    $region34: #{my_transformer_forward.1} parent=1 // pred_check
      _
    $region35: #{my_transformer_forward.1} parent=1 // pred_check_branch
      %39 = sbr.rel (0) target = $region37
    $region36: #{my_transformer_forward.1} parent=1 // pred_region
      _
    $region37: #{my_transformer_forward.1} parent=1 // pred_fallthru
      _
    // Predicated region
    $region38: #{my_transformer_forward.1} parent=1 // pred_check
      _
    $region39: #{my_transformer_forward.1} parent=1 // pred_check_branch
      %41 = sbr.rel (0) target = $region41
    $region40: #{my_transformer_forward.1} parent=1 // pred_region
      _
    $region41: #{my_transformer_forward.1} parent=1 // pred_fallthru
      _
    // Predicated region
    $region42: #{my_transformer_forward.1} parent=1 // pred_check
      _
    $region43: #{my_transformer_forward.1} parent=1 // pred_check_branch
      %43 = sbr.rel (0) target = $region45
    $region44: #{my_transformer_forward.1} parent=1 // pred_region
      _
    $region45: #{my_transformer_forward.1} parent=1 // pred_fallthru
      _
    // Predicated region
    $region46: #{my_transformer_forward.1} parent=1 // pred_check
      _
    $region47: #{my_transformer_forward.1} parent=1 // pred_check_branch
      %45 = sbr.rel (0) target = $region49
    $region48: #{my_transformer_forward.1} parent=1 // pred_region
      _
    $region49: #{my_transformer_forward.1} parent=1 // pred_fallthru
      _
    // Predicated region
    $region50: #{my_transformer_forward.1} parent=1 // pred_check
      _
    $region51: #{my_transformer_forward.1} parent=1 // pred_check_branch
      %47 = sbr.rel (0) target = $region53
    $region52: #{my_transformer_forward.1} parent=1 // pred_region
      _
    $region53: #{my_transformer_forward.1} parent=1 // pred_fallthru
      _
    // Predicated region
    $region54: #{my_transformer_forward.1} parent=1 // pred_check
      _
    $region55: #{my_transformer_forward.1} parent=1 // pred_check_branch
      %49 = sbr.rel (0) target = $region57
    $region56: #{my_transformer_forward.1} parent=1 // pred_region
      _
    $region57: #{my_transformer_forward.1} parent=1 // pred_fallthru
      _
    // Predicated region
    $region58: #{my_transformer_forward.1} parent=1 // pred_check
      _
    $region59: #{my_transformer_forward.1} parent=1 // pred_check_branch
      %51 = sbr.rel (0) target = $region61
    $region60: #{my_transformer_forward.1} parent=1 // pred_region
      _
    $region61: #{my_transformer_forward.1} parent=1 // pred_fallthru
      _
    // Predicated region
    $region62: #{my_transformer_forward.1} parent=1 // pred_check
      _
    $region63: #{my_transformer_forward.1} parent=1 // pred_check_branch
      %53 = sbr.rel (0) target = $region65
    $region64: #{my_transformer_forward.1} parent=1 // pred_region
      _
    $region65: #{my_transformer_forward.1} parent=1 // pred_fallthru
      _
    %v55 = vld [vmem:[%s0] sm:$0xff]
    %v56 = vld [vmem:[%s0 + $0x8] sm:$0xff]
    %v57 = vlaneseq
    %v58 = vshrl.u32 %v57, 7
    %v59 = vlaneseq
    %v60 = vand.u32 %v59, 127
    %vm61 = vcmp.ge.s32.totalorder %v58, %v60
    %v62 = vld [vmem:[%s1] sm:$0x1]
    %v63 = vld [vmem:[%s2] sm:$0x1]
    %vm64 = vcmask 261120
    %v65 = vsel %vm64, %v55, 0.0
    %66 = vadd.xlane.f32.xlu0 %v65
    %v67 = vpop.xlane.xlu0 %66
    %v68 = vsel %vm64, %v56, 0.0
    %69 = vadd.xlane.f32.xlu0 %v68
    %v70 = vpop.xlane.xlu0 %69
    %v71 = vrcp.pop 32.0
    %v72 = vmul.f32 32.0, %v71
    %v73 = vsub.f32 1.0, %v72
    %v74 = vmul.f32 %v71, %v73
    %v75 = vadd.f32 %v71, %v74
    %vm76 = vweird.f32 %v71
    %v77 = vsel %vm76, %v71, %v75
    %v78 = vmul.f32 %v67, %v77
    %v79 = vmul.f32 %v70, %v77
    %v80 = vsub.f32 %v55, %v78
    %v81 = vsub.f32 %v56, %v79
    %v82 = vmul.f32 %v80, %v80
    %v83 = vmul.f32 %v81, %v81
    %v84 = vsel %vm64, %v82, 0.0
    %85 = vadd.xlane.f32.xlu0 %v84
    %v86 = vpop.xlane.xlu0 %85
    %v87 = vsel %vm64, %v83, 0.0
    %88 = vadd.xlane.f32.xlu0 %v87
    %v89 = vpop.xlane.xlu0 %88
    %v90 = vmul.f32 %v86, %v77
    %v91 = vmul.f32 %v89, %v77
    %v92 = vadd.f32 %v90, 1e-05
    %v93 = vadd.f32 %v91, 1e-05
    %v94 = vrsqrt.pop %v92
    %v95 = vmul.f32 %v94, %v92
    %v96 = vmul.f32 %v95, %v94
    %v97 = vmul.f32 0.5, %v96
    %v98 = vsub.f32 1.5, %v97
    %v99 = vmul.f32 %v94, %v98
    %vm100 = vweird.f32 %v92
    %vm101 = vweird.f32 %v94
    %vm102 = vmor %vm100, %vm101
    %v103 = vsel %vm102, %v94, %v99
    %v104 = vrsqrt.pop %v93
    %v105 = vmul.f32 %v104, %v93
    %v106 = vmul.f32 %v105, %v104
    %v107 = vmul.f32 0.5, %v106
    %v108 = vsub.f32 1.5, %v107
    %v109 = vmul.f32 %v104, %v108
    %vm110 = vweird.f32 %v93
    %vm111 = vweird.f32 %v104
    %vm112 = vmor %vm110, %vm111
    %v113 = vsel %vm112, %v104, %v109
    %v114 = vmul.f32 %v80, %v103
    %v115 = vmul.f32 %v81, %v113
    %v117 = vperm.slane %v62, 0
    %v119 = vmul.f32 %v114, %v117
    %v120 = vmul.f32 %v115, %v117
    %v122 = vperm.slane %v63, 0
    %v124 = vadd.f32 %v119, %v122
    %v125 = vadd.f32 %v120, %v122
    %v126 = vpack.c.bf16 %v125, %v124
    %v127 = vld [vmem:[%s3] sm:$0xf]
    %v128 = vld [vmem:[%s3 + $0x4] sm:$0xf]
    %v129 = vld [vmem:[%s3 + $0x8] sm:$0xf]
    %v130 = vld [vmem:[%s3 + $0xc] sm:$0xf]
    %v131 = vld [vmem:[%s4] sm:$0x1]
    %v133 = vperm.slane %v131, 0
    %v139 = vunpack.c.l.b16 %v127
    %v140 = vunpack.c.l.b16 %v128
    %v141 = vunpack.c.l.b16 %v129
    %v142 = vunpack.c.l.b16 %v130
    %v143 = vpack.c.b16 %v140, %v139
    %v144 = vpack.c.b16 %v142, %v141
    %v148 = vsel %vm64, %v126, 0
    %150 = vmatpush.bf16.msra.mxu0 0
    %151 = vmatpush.bf16.msra.mxu0 0
    %152 = vmatpush.bf16.msra.mxu0 0
    %153 = vmatpush.bf16.msra.mxu0 0
    %154 = vmatpush.bf16.msra.mxu0 0
    %155 = vmatpush.bf16.msra.mxu0 0
    %156 = vmatpush.bf16.msra.mxu0 %v144
    %157 = vmatpush.bf16.msra.mxu0 %v143
    %158 = vmatmul.bf16.gmra.mxu0 %v148
    %v159 = vpop.f32.mrf.mxu0
    %v160 = vadd.f32 %v133, %v159
    %v161 = vpop.f32.mrf.mxu0
    %v162 = vadd.f32 %v133, %v161
    %163 = vdwg.mxu0
    %v164 = vld [vmem:[%s5] sm:$0xf]
    %v165 = vld [vmem:[%s5 + $0x4] sm:$0xf]
    %v166 = vld [vmem:[%s5 + $0x8] sm:$0xf]
    %v167 = vld [vmem:[%s5 + $0xc] sm:$0xf]
    %v168 = vpack.c.bf16 %v160, %v160
    %v169 = vpack.c.bf16 %v162, %v162
    %v171 = vunpack.c.l.b16 %v168
    %v172 = vpack.c.b16 %v171, %v171
    %173 = vrot.lane.b32.xlu0 %v172, 96
    %v174 = vpop.permute.xlu0 %173
    %vm175 = vcmask 64512
    %v177 = vsel %vm175, %v168, 0
    %v180 = vsel %vm175, %v174, 0
    %182 = vmatpush.bf16.xpose.msra.mxu0 0
    %183 = vmatpush.bf16.xpose.msra.mxu0 0
    %184 = vmatpush.bf16.xpose.msra.mxu0 0
    %185 = vmatpush.bf16.xpose.msra.mxu0 0
    %186 = vmatpush.bf16.xpose.msra.mxu0 0
    %187 = vmatpush.bf16.xpose.msra.mxu0 0
    %188 = vmatpush.bf16.xpose.msra.mxu0 0
    %189 = vmatpush.bf16.xpose.msra.mxu0 %v180
    %190 = vmatmul.bf16.gmra.mxu0 %v177
    %v191 = vpop.f32.mrf.mxu0
    %v192 = vadd.f32 0.0, %v191
    %v193 = vpop.f32.mrf.mxu0
    %194 = vdwg.mxu0
    %v196 = vunpack.c.l.b16 %v169
    %v197 = vpack.c.b16 %v196, %v196
    %198 = vrot.lane.b32.xlu0 %v197, 96
    %v199 = vpop.permute.xlu0 %198
    %v201 = vsel %vm175, %v169, 0
    %v204 = vsel %vm175, %v199, 0
    %206 = vmatpush.bf16.xpose.msra.mxu0 0
    %207 = vmatpush.bf16.xpose.msra.mxu0 0
    %208 = vmatpush.bf16.xpose.msra.mxu0 0
    %209 = vmatpush.bf16.xpose.msra.mxu0 0
    %210 = vmatpush.bf16.xpose.msra.mxu0 0
    %211 = vmatpush.bf16.xpose.msra.mxu0 0
    %212 = vmatpush.bf16.xpose.msra.mxu0 0
    %213 = vmatpush.bf16.xpose.msra.mxu0 %v204
    %214 = vmatmul.bf16.gmra.mxu0 %v201
    %v215 = vpop.f32.mrf.mxu0
    %v216 = vadd.f32 0.0, %v215
    %v217 = vpop.f32.mrf.mxu0
    %218 = vdwg.mxu0
    %v219 = vsel %vm61, 1, 0
    %vm220 = vcmp.eq.s32.totalorder %v219, 1
    %v221 = vsel %vm220, %v192, -3.4028235e+38
    %v222 = vsel %vm220, %v216, -3.4028235e+38
    %v223 = vsel %vm175, %v221, -inf
    %224 = vmax.xlane.f32.xlu0 %v223
    %v225 = vpop.xlane.xlu0 %224
    %v226 = vsel %vm175, %v222, -inf
    %227 = vmax.xlane.f32.xlu0 %v226
    %v228 = vpop.xlane.xlu0 %227
    %v229 = vsub.f32 %v221, %v225
    %v230 = vsub.f32 %v222, %v228
    %v231 = vmul.f32 %v229, 1.442695
    %v232 = vpow.pop %v231
    %v233 = vmul.f32 %v230, 1.442695
    %v234 = vpow.pop %v233
    %v235 = vsel %vm175, %v232, 0.0
    %236 = vadd.xlane.f32.xlu0 %v235
    %v237 = vpop.xlane.xlu0 %236
    %v238 = vsel %vm175, %v234, 0.0
    %239 = vadd.xlane.f32.xlu0 %v238
    %v240 = vpop.xlane.xlu0 %239
    %v241 = vrcp.pop %v237
    %v242 = vrcp.pop %v240
    %v243 = vmul.f32 %v232, %v241
    %v244 = vmul.f32 %v234, %v242
    %v245 = vpack.c.bf16 %v243, %v243
    %v246 = vpack.c.bf16 %v244, %v244
    %247 = vrot.lane.b32.xlu0 %v172, 64
    %v248 = vpop.permute.xlu0 %247
    %v250 = vsel %vm175, %v245, 0
    %vm252 = vcmask 1043456
    %v254 = vsel %vm252, %v248, 0
    %256 = vmatpush.bf16.msra.mxu0 0
    %257 = vmatpush.bf16.msra.mxu0 0
    %258 = vmatpush.bf16.msra.mxu0 0
    %259 = vmatpush.bf16.msra.mxu0 0
    %260 = vmatpush.bf16.msra.mxu0 0
    %261 = vmatpush.bf16.msra.mxu0 0
    %262 = vmatpush.bf16.msra.mxu0 0
    %263 = vmatpush.bf16.msra.mxu0 %v254
    %264 = vmatmul.bf16.gmra.mxu0 %v250
    %v265 = vpop.f32.mrf.mxu0
    %v266 = vadd.f32 0.0, %v265
    %v267 = vpop.f32.mrf.mxu0
    %268 = vdwg.mxu0
    %269 = vrot.lane.b32.xlu0 %v197, 64
    %v270 = vpop.permute.xlu0 %269
    %v272 = vsel %vm175, %v246, 0
    %v275 = vsel %vm252, %v270, 0
    %277 = vmatpush.bf16.msra.mxu0 0
    %278 = vmatpush.bf16.msra.mxu0 0
    %279 = vmatpush.bf16.msra.mxu0 0
    %280 = vmatpush.bf16.msra.mxu0 0
    %281 = vmatpush.bf16.msra.mxu0 0
    %282 = vmatpush.bf16.msra.mxu0 0
    %283 = vmatpush.bf16.msra.mxu0 0
    %284 = vmatpush.bf16.msra.mxu0 %v275
    %285 = vmatmul.bf16.gmra.mxu0 %v272
    %v286 = vpop.f32.mrf.mxu0
    %v287 = vadd.f32 0.0, %v286
    %v288 = vpop.f32.mrf.mxu0
    %289 = vdwg.mxu0
    %v290 = vpack.c.bf16 %v287, %v266
    %291 = vrot.lane.b32.xlu0 %v172, 120
    %v292 = vpop.permute.xlu0 %291
    %293 = vrot.lane.b32.xlu0 %v172, 88
    %v294 = vpop.permute.xlu0 %293
    %v296 = vsel %vm175, %v292, 0
    %v299 = vsel %vm175, %v294, 0
    %301 = vmatpush.bf16.xpose.msra.mxu0 0
    %302 = vmatpush.bf16.xpose.msra.mxu0 0
    %303 = vmatpush.bf16.xpose.msra.mxu0 0
    %304 = vmatpush.bf16.xpose.msra.mxu0 0
    %305 = vmatpush.bf16.xpose.msra.mxu0 0
    %306 = vmatpush.bf16.xpose.msra.mxu0 0
    %307 = vmatpush.bf16.xpose.msra.mxu0 0
    %308 = vmatpush.bf16.xpose.msra.mxu0 %v299
    %309 = vmatmul.bf16.gmra.mxu0 %v296
    %v310 = vpop.f32.mrf.mxu0
    %v311 = vadd.f32 0.0, %v310
    %v312 = vpop.f32.mrf.mxu0
    %313 = vdwg.mxu0
    %314 = vrot.lane.b32.xlu0 %v197, 120
    %v315 = vpop.permute.xlu0 %314
    %316 = vrot.lane.b32.xlu0 %v197, 88
    %v317 = vpop.permute.xlu0 %316
    %v319 = vsel %vm175, %v315, 0
    %v322 = vsel %vm175, %v317, 0
    %324 = vmatpush.bf16.xpose.msra.mxu0 0
    %325 = vmatpush.bf16.xpose.msra.mxu0 0
    %326 = vmatpush.bf16.xpose.msra.mxu0 0
    %327 = vmatpush.bf16.xpose.msra.mxu0 0
    %328 = vmatpush.bf16.xpose.msra.mxu0 0
    %329 = vmatpush.bf16.xpose.msra.mxu0 0
    %330 = vmatpush.bf16.xpose.msra.mxu0 0
    %331 = vmatpush.bf16.xpose.msra.mxu0 %v322
    %332 = vmatmul.bf16.gmra.mxu0 %v319
    %v333 = vpop.f32.mrf.mxu0
    %v334 = vadd.f32 0.0, %v333
    %v335 = vpop.f32.mrf.mxu0
    %336 = vdwg.mxu0
    %v337 = vsel %vm220, %v311, -3.4028235e+38
    %v338 = vsel %vm220, %v334, -3.4028235e+38
    %v339 = vsel %vm175, %v337, -inf
    %340 = vmax.xlane.f32.xlu0 %v339
    %v341 = vpop.xlane.xlu0 %340
    %v342 = vsel %vm175, %v338, -inf
    %343 = vmax.xlane.f32.xlu0 %v342
    %v344 = vpop.xlane.xlu0 %343
    %v345 = vsub.f32 %v337, %v341
    %v346 = vsub.f32 %v338, %v344
    %v347 = vmul.f32 %v345, 1.442695
    %v348 = vpow.pop %v347
    %v349 = vmul.f32 %v346, 1.442695
    %v350 = vpow.pop %v349
    %v351 = vsel %vm175, %v348, 0.0
    %352 = vadd.xlane.f32.xlu0 %v351
    %v353 = vpop.xlane.xlu0 %352
    %v354 = vsel %vm175, %v350, 0.0
    %355 = vadd.xlane.f32.xlu0 %v354
    %v356 = vpop.xlane.xlu0 %355
    %v357 = vrcp.pop %v353
    %v358 = vrcp.pop %v356
    %v359 = vmul.f32 %v348, %v357
    %v360 = vmul.f32 %v350, %v358
    %v361 = vpack.c.bf16 %v359, %v359
    %v362 = vpack.c.bf16 %v360, %v360
    %363 = vrot.lane.b32.xlu0 %v172, 56
    %v364 = vpop.permute.xlu0 %363
    %v366 = vsel %vm175, %v361, 0
    %v369 = vsel %vm252, %v364, 0
    %371 = vmatpush.bf16.msra.mxu0 0
    %372 = vmatpush.bf16.msra.mxu0 0
    %373 = vmatpush.bf16.msra.mxu0 0
    %374 = vmatpush.bf16.msra.mxu0 0
    %375 = vmatpush.bf16.msra.mxu0 0
    %376 = vmatpush.bf16.msra.mxu0 0
    %377 = vmatpush.bf16.msra.mxu0 0
    %378 = vmatpush.bf16.msra.mxu0 %v369
    %379 = vmatmul.bf16.gmra.mxu0 %v366
    %v380 = vpop.f32.mrf.mxu0
    %v381 = vadd.f32 0.0, %v380
    %v382 = vpop.f32.mrf.mxu0
    %383 = vdwg.mxu0
    %384 = vrot.lane.b32.xlu0 %v197, 56
    %v385 = vpop.permute.xlu0 %384
    %v387 = vsel %vm175, %v362, 0
    %v390 = vsel %vm252, %v385, 0
    %392 = vmatpush.bf16.msra.mxu0 0
    %393 = vmatpush.bf16.msra.mxu0 0
    %394 = vmatpush.bf16.msra.mxu0 0
    %395 = vmatpush.bf16.msra.mxu0 0
    %396 = vmatpush.bf16.msra.mxu0 0
    %397 = vmatpush.bf16.msra.mxu0 0
    %398 = vmatpush.bf16.msra.mxu0 0
    %399 = vmatpush.bf16.msra.mxu0 %v390
    %400 = vmatmul.bf16.gmra.mxu0 %v387
    %v401 = vpop.f32.mrf.mxu0
    %v402 = vadd.f32 0.0, %v401
    %v403 = vpop.f32.mrf.mxu0
    %404 = vdwg.mxu0
    %v405 = vpack.c.bf16 %v402, %v381
    %v407 = vsel %vm175, %v405, 0
    %v410 = vsel %vm252, %v165, 0
    %412 = vmatpush.bf16.msra.mxu0 0
    %413 = vmatpush.bf16.msra.mxu0 0
    %414 = vmatpush.bf16.msra.mxu0 0
    %415 = vmatpush.bf16.msra.mxu0 0
    %416 = vmatpush.bf16.msra.mxu0 0
    %417 = vmatpush.bf16.msra.mxu0 0
    %418 = vmatpush.bf16.msra.mxu0 0
    %419 = vmatpush.bf16.msra.mxu0 %v410
    %420 = vmatmul.bf16.gmra.mxu0 %v407
    %v421 = vpop.f32.mrf.mxu0
    %v422 = vadd.f32 0.0, %v421
    %v423 = vpop.f32.mrf.mxu0
    %v424 = vadd.f32 0.0, %v423
    %425 = vdwg.mxu0
    %v427 = vsel %vm175, %v290, 0
    %v430 = vsel %vm252, %v164, 0
    %432 = vmatpush.bf16.msra.mxu0 0
    %433 = vmatpush.bf16.msra.mxu0 0
    %434 = vmatpush.bf16.msra.mxu0 0
    %435 = vmatpush.bf16.msra.mxu0 0
    %436 = vmatpush.bf16.msra.mxu0 0
    %437 = vmatpush.bf16.msra.mxu0 0
    %438 = vmatpush.bf16.msra.mxu0 0
    %439 = vmatpush.bf16.msra.mxu0 %v430
    %440 = vmatmul.bf16.gmra.mxu0 %v427
    %v441 = vpop.f32.mrf.mxu0
    %v442 = vadd.f32 %v422, %v441
    %v443 = vpop.f32.mrf.mxu0
    %v444 = vadd.f32 %v424, %v443
    %445 = vdwg.mxu0
    %446 = vrot.lane.b32.xlu0 %v172, 112
    %v447 = vpop.permute.xlu0 %446
    %448 = vrot.lane.b32.xlu0 %v172, 80
    %v449 = vpop.permute.xlu0 %448
    %v451 = vsel %vm175, %v447, 0
    %v454 = vsel %vm175, %v449, 0
    %456 = vmatpush.bf16.xpose.msra.mxu0 0
    %457 = vmatpush.bf16.xpose.msra.mxu0 0
    %458 = vmatpush.bf16.xpose.msra.mxu0 0
    %459 = vmatpush.bf16.xpose.msra.mxu0 0
    %460 = vmatpush.bf16.xpose.msra.mxu0 0
    %461 = vmatpush.bf16.xpose.msra.mxu0 0
    %462 = vmatpush.bf16.xpose.msra.mxu0 0
    %463 = vmatpush.bf16.xpose.msra.mxu0 %v454
    %464 = vmatmul.bf16.gmra.mxu0 %v451
    %v465 = vpop.f32.mrf.mxu0
    %v466 = vadd.f32 0.0, %v465
    %v467 = vpop.f32.mrf.mxu0
    %468 = vdwg.mxu0
    %469 = vrot.lane.b32.xlu0 %v197, 112
    %v470 = vpop.permute.xlu0 %469
    %471 = vrot.lane.b32.xlu0 %v197, 80
    %v472 = vpop.permute.xlu0 %471
    %v474 = vsel %vm175, %v470, 0
    %v477 = vsel %vm175, %v472, 0
    %479 = vmatpush.bf16.xpose.msra.mxu0 0
    %480 = vmatpush.bf16.xpose.msra.mxu0 0
    %481 = vmatpush.bf16.xpose.msra.mxu0 0
    %482 = vmatpush.bf16.xpose.msra.mxu0 0
    %483 = vmatpush.bf16.xpose.msra.mxu0 0
    %484 = vmatpush.bf16.xpose.msra.mxu0 0
    %485 = vmatpush.bf16.xpose.msra.mxu0 0
    %486 = vmatpush.bf16.xpose.msra.mxu0 %v477
    %487 = vmatmul.bf16.gmra.mxu0 %v474
    %v488 = vpop.f32.mrf.mxu0
    %v489 = vadd.f32 0.0, %v488
    %v490 = vpop.f32.mrf.mxu0
    %491 = vdwg.mxu0
    %v492 = vsel %vm220, %v466, -3.4028235e+38
    %v493 = vsel %vm220, %v489, -3.4028235e+38
    %v494 = vsel %vm175, %v492, -inf
    %495 = vmax.xlane.f32.xlu0 %v494
    %v496 = vpop.xlane.xlu0 %495
    %v497 = vsel %vm175, %v493, -inf
    %498 = vmax.xlane.f32.xlu0 %v497
    %v499 = vpop.xlane.xlu0 %498
    %v500 = vsub.f32 %v492, %v496
    %v501 = vsub.f32 %v493, %v499
    %v502 = vmul.f32 %v500, 1.442695
    %v503 = vpow.pop %v502
    %v504 = vmul.f32 %v501, 1.442695
    %v505 = vpow.pop %v504
    %v506 = vsel %vm175, %v503, 0.0
    %507 = vadd.xlane.f32.xlu0 %v506
    %v508 = vpop.xlane.xlu0 %507
    %v509 = vsel %vm175, %v505, 0.0
    %510 = vadd.xlane.f32.xlu0 %v509
    %v511 = vpop.xlane.xlu0 %510
    %v512 = vrcp.pop %v508
    %v513 = vrcp.pop %v511
    %v514 = vmul.f32 %v503, %v512
    %v515 = vmul.f32 %v505, %v513
    %v516 = vpack.c.bf16 %v514, %v514
    %v517 = vpack.c.bf16 %v515, %v515
    %518 = vrot.lane.b32.xlu0 %v172, 48
    %v519 = vpop.permute.xlu0 %518
    %v521 = vsel %vm175, %v516, 0
    %v524 = vsel %vm252, %v519, 0
    %526 = vmatpush.bf16.msra.mxu0 0
    %527 = vmatpush.bf16.msra.mxu0 0
    %528 = vmatpush.bf16.msra.mxu0 0
    %529 = vmatpush.bf16.msra.mxu0 0
    %530 = vmatpush.bf16.msra.mxu0 0
    %531 = vmatpush.bf16.msra.mxu0 0
    %532 = vmatpush.bf16.msra.mxu0 0
    %533 = vmatpush.bf16.msra.mxu0 %v524
    %534 = vmatmul.bf16.gmra.mxu0 %v521
    %v535 = vpop.f32.mrf.mxu0
    %v536 = vadd.f32 0.0, %v535
    %v537 = vpop.f32.mrf.mxu0
    %538 = vdwg.mxu0
    %539 = vrot.lane.b32.xlu0 %v197, 48
    %v540 = vpop.permute.xlu0 %539
    %v542 = vsel %vm175, %v517, 0
    %v545 = vsel %vm252, %v540, 0
    %547 = vmatpush.bf16.msra.mxu0 0
    %548 = vmatpush.bf16.msra.mxu0 0
    %549 = vmatpush.bf16.msra.mxu0 0
    %550 = vmatpush.bf16.msra.mxu0 0
    %551 = vmatpush.bf16.msra.mxu0 0
    %552 = vmatpush.bf16.msra.mxu0 0
    %553 = vmatpush.bf16.msra.mxu0 0
    %554 = vmatpush.bf16.msra.mxu0 %v545
    %555 = vmatmul.bf16.gmra.mxu0 %v542
    %v556 = vpop.f32.mrf.mxu0
    %v557 = vadd.f32 0.0, %v556
    %v558 = vpop.f32.mrf.mxu0
    %559 = vdwg.mxu0
    %v560 = vpack.c.bf16 %v557, %v536
    %v562 = vsel %vm175, %v560, 0
    %v565 = vsel %vm252, %v166, 0
    %567 = vmatpush.bf16.msra.mxu0 0
    %568 = vmatpush.bf16.msra.mxu0 0
    %569 = vmatpush.bf16.msra.mxu0 0
    %570 = vmatpush.bf16.msra.mxu0 0
    %571 = vmatpush.bf16.msra.mxu0 0
    %572 = vmatpush.bf16.msra.mxu0 0
    %573 = vmatpush.bf16.msra.mxu0 0
    %574 = vmatpush.bf16.msra.mxu0 %v565
    %575 = vmatmul.bf16.gmra.mxu0 %v562
    %v576 = vpop.f32.mrf.mxu0
    %v577 = vadd.f32 0.0, %v576
    %v578 = vpop.f32.mrf.mxu0
    %v579 = vadd.f32 0.0, %v578
    %580 = vdwg.mxu0
    %v581 = vadd.f32 %v442, %v577
    %v582 = vadd.f32 %v444, %v579
    %583 = vrot.lane.b32.xlu0 %v172, 104
    %v584 = vpop.permute.xlu0 %583
    %585 = vrot.lane.b32.xlu0 %v172, 72
    %v586 = vpop.permute.xlu0 %585
    %v588 = vsel %vm175, %v584, 0
    %v591 = vsel %vm175, %v586, 0
    %593 = vmatpush.bf16.xpose.msra.mxu0 0
    %594 = vmatpush.bf16.xpose.msra.mxu0 0
    %595 = vmatpush.bf16.xpose.msra.mxu0 0
    %596 = vmatpush.bf16.xpose.msra.mxu0 0
    %597 = vmatpush.bf16.xpose.msra.mxu0 0
    %598 = vmatpush.bf16.xpose.msra.mxu0 0
    %599 = vmatpush.bf16.xpose.msra.mxu0 0
    %600 = vmatpush.bf16.xpose.msra.mxu0 %v591
    %601 = vmatmul.bf16.gmra.mxu0 %v588
    %v602 = vpop.f32.mrf.mxu0
    %v603 = vadd.f32 0.0, %v602
    %v604 = vpop.f32.mrf.mxu0
    %605 = vdwg.mxu0
    %606 = vrot.lane.b32.xlu0 %v197, 104
    %v607 = vpop.permute.xlu0 %606
    %608 = vrot.lane.b32.xlu0 %v197, 72
    %v609 = vpop.permute.xlu0 %608
    %v611 = vsel %vm175, %v607, 0
    %v614 = vsel %vm175, %v609, 0
    %616 = vmatpush.bf16.xpose.msra.mxu0 0
    %617 = vmatpush.bf16.xpose.msra.mxu0 0
    %618 = vmatpush.bf16.xpose.msra.mxu0 0
    %619 = vmatpush.bf16.xpose.msra.mxu0 0
    %620 = vmatpush.bf16.xpose.msra.mxu0 0
    %621 = vmatpush.bf16.xpose.msra.mxu0 0
    %622 = vmatpush.bf16.xpose.msra.mxu0 0
    %623 = vmatpush.bf16.xpose.msra.mxu0 %v614
    %624 = vmatmul.bf16.gmra.mxu0 %v611
    %v625 = vpop.f32.mrf.mxu0
    %v626 = vadd.f32 0.0, %v625
    %v627 = vpop.f32.mrf.mxu0
    %628 = vdwg.mxu0
    %v629 = vsel %vm220, %v603, -3.4028235e+38
    %v630 = vsel %vm220, %v626, -3.4028235e+38
    %v631 = vsel %vm175, %v629, -inf
    %632 = vmax.xlane.f32.xlu0 %v631
    %v633 = vpop.xlane.xlu0 %632
    %v634 = vsel %vm175, %v630, -inf
    %635 = vmax.xlane.f32.xlu0 %v634
    %v636 = vpop.xlane.xlu0 %635
    %v637 = vsub.f32 %v629, %v633
    %v638 = vsub.f32 %v630, %v636
    %v639 = vmul.f32 %v637, 1.442695
    %v640 = vpow.pop %v639
    %v641 = vmul.f32 %v638, 1.442695
    %v642 = vpow.pop %v641
    %v643 = vsel %vm175, %v640, 0.0
    %644 = vadd.xlane.f32.xlu0 %v643
    %v645 = vpop.xlane.xlu0 %644
    %v646 = vsel %vm175, %v642, 0.0
    %647 = vadd.xlane.f32.xlu0 %v646
    %v648 = vpop.xlane.xlu0 %647
    %v649 = vrcp.pop %v645
    %v650 = vrcp.pop %v648
    %v651 = vmul.f32 %v640, %v649
    %v652 = vmul.f32 %v642, %v650
    %v653 = vpack.c.bf16 %v651, %v651
    %v654 = vpack.c.bf16 %v652, %v652
    %655 = vrot.lane.b32.xlu0 %v172, 40
    %v656 = vpop.permute.xlu0 %655
    %v658 = vsel %vm175, %v653, 0
    %v661 = vsel %vm252, %v656, 0
    %663 = vmatpush.bf16.msra.mxu0 0
    %664 = vmatpush.bf16.msra.mxu0 0
    %665 = vmatpush.bf16.msra.mxu0 0
    %666 = vmatpush.bf16.msra.mxu0 0
    %667 = vmatpush.bf16.msra.mxu0 0
    %668 = vmatpush.bf16.msra.mxu0 0
    %669 = vmatpush.bf16.msra.mxu0 0
    %670 = vmatpush.bf16.msra.mxu0 %v661
    %671 = vmatmul.bf16.gmra.mxu0 %v658
    %v672 = vpop.f32.mrf.mxu0
    %v673 = vadd.f32 0.0, %v672
    %v674 = vpop.f32.mrf.mxu0
    %675 = vdwg.mxu0
    %676 = vrot.lane.b32.xlu0 %v197, 40
    %v677 = vpop.permute.xlu0 %676
    %v679 = vsel %vm175, %v654, 0
    %v682 = vsel %vm252, %v677, 0
    %684 = vmatpush.bf16.msra.mxu0 0
    %685 = vmatpush.bf16.msra.mxu0 0
    %686 = vmatpush.bf16.msra.mxu0 0
    %687 = vmatpush.bf16.msra.mxu0 0
    %688 = vmatpush.bf16.msra.mxu0 0
    %689 = vmatpush.bf16.msra.mxu0 0
    %690 = vmatpush.bf16.msra.mxu0 0
    %691 = vmatpush.bf16.msra.mxu0 %v682
    %692 = vmatmul.bf16.gmra.mxu0 %v679
    %v693 = vpop.f32.mrf.mxu0
    %v694 = vadd.f32 0.0, %v693
    %v695 = vpop.f32.mrf.mxu0
    %696 = vdwg.mxu0
    %v697 = vpack.c.bf16 %v694, %v673
    %v699 = vsel %vm175, %v697, 0
    %v702 = vsel %vm252, %v167, 0
    %704 = vmatpush.bf16.msra.mxu0 0
    %705 = vmatpush.bf16.msra.mxu0 0
    %706 = vmatpush.bf16.msra.mxu0 0
    %707 = vmatpush.bf16.msra.mxu0 0
    %708 = vmatpush.bf16.msra.mxu0 0
    %709 = vmatpush.bf16.msra.mxu0 0
    %710 = vmatpush.bf16.msra.mxu0 0
    %711 = vmatpush.bf16.msra.mxu0 %v702
    %712 = vmatmul.bf16.gmra.mxu0 %v699
    %v713 = vpop.f32.mrf.mxu0
    %v714 = vadd.f32 0.0, %v713
    %v715 = vpop.f32.mrf.mxu0
    %v716 = vadd.f32 0.0, %v715
    %717 = vdwg.mxu0
    %v718 = vadd.f32 %v581, %v714
    %v719 = vadd.f32 %v582, %v716
    %v720 = vadd.f32 %v55, %v718
    %v721 = vadd.f32 %v56, %v719
    %v722 = vld [vmem:[%s6] sm:$0x1]
    %v724 = vperm.slane %v722, 0
    %v726 = vadd.f32 %v720, %v724
    %v727 = vadd.f32 %v721, %v724
    %v728 = vld [vmem:[%s7] sm:$0x1]
    %v729 = vld [vmem:[%s8] sm:$0x1]
    %v730 = vsel %vm64, %v726, 0.0
    %731 = vadd.xlane.f32.xlu0 %v730
    %v732 = vpop.xlane.xlu0 %731
    %v733 = vsel %vm64, %v727, 0.0
    %734 = vadd.xlane.f32.xlu0 %v733
    %v735 = vpop.xlane.xlu0 %734
    %v736 = vmul.f32 %v732, %v77
    %v737 = vmul.f32 %v735, %v77
    %v738 = vsub.f32 %v726, %v736
    %v739 = vsub.f32 %v727, %v737
    %v740 = vmul.f32 %v738, %v738
    %v741 = vmul.f32 %v739, %v739
    %v742 = vsel %vm64, %v740, 0.0
    %743 = vadd.xlane.f32.xlu0 %v742
    %v744 = vpop.xlane.xlu0 %743
    %v745 = vsel %vm64, %v741, 0.0
    %746 = vadd.xlane.f32.xlu0 %v745
    %v747 = vpop.xlane.xlu0 %746
    %v748 = vmul.f32 %v744, %v77
    %v749 = vmul.f32 %v747, %v77
    %v750 = vadd.f32 %v748, 1e-05
    %v751 = vadd.f32 %v749, 1e-05
    %v752 = vrsqrt.pop %v750
    %v753 = vmul.f32 %v752, %v750
    %v754 = vmul.f32 %v753, %v752
    %v755 = vmul.f32 0.5, %v754
    %v756 = vsub.f32 1.5, %v755
    %v757 = vmul.f32 %v752, %v756
    %vm758 = vweird.f32 %v750
    %vm759 = vweird.f32 %v752
    %vm760 = vmor %vm758, %vm759
    %v761 = vsel %vm760, %v752, %v757
    %v762 = vrsqrt.pop %v751
    %v763 = vmul.f32 %v762, %v751
    %v764 = vmul.f32 %v763, %v762
    %v765 = vmul.f32 0.5, %v764
    %v766 = vsub.f32 1.5, %v765
    %v767 = vmul.f32 %v762, %v766
    %vm768 = vweird.f32 %v751
    %vm769 = vweird.f32 %v762
    %vm770 = vmor %vm768, %vm769
    %v771 = vsel %vm770, %v762, %v767
    %v772 = vmul.f32 %v738, %v761
    %v773 = vmul.f32 %v739, %v771
    %v775 = vperm.slane %v728, 0
    %v777 = vmul.f32 %v772, %v775
    %v778 = vmul.f32 %v773, %v775
    %v780 = vperm.slane %v729, 0
    %v782 = vadd.f32 %v777, %v780
    %v783 = vadd.f32 %v778, %v780
    %v784 = vpack.c.bf16 %v783, %v782
    %v785 = vld [vmem:[%s9] sm:$0xf]
    %v786 = vld [vmem:[%s9 + $0x4] sm:$0xf]
    %v787 = vld [vmem:[%s9 + $0x8] sm:$0xf]
    %v788 = vld [vmem:[%s9 + $0xc] sm:$0xf]
    %v789 = vld [vmem:[%s10] sm:$0x1]
    %v791 = vperm.slane %v789, 0
    %v797 = vunpack.c.l.b16 %v785
    %v798 = vunpack.c.l.b16 %v786
    %v799 = vunpack.c.l.b16 %v787
    %v800 = vunpack.c.l.b16 %v788
    %v801 = vpack.c.b16 %v798, %v797
    %v802 = vpack.c.b16 %v800, %v799
    %v806 = vsel %vm64, %v784, 0
    %808 = vmatpush.bf16.msra.mxu0 0
    %809 = vmatpush.bf16.msra.mxu0 0
    %810 = vmatpush.bf16.msra.mxu0 0
    %811 = vmatpush.bf16.msra.mxu0 0
    %812 = vmatpush.bf16.msra.mxu0 0
    %813 = vmatpush.bf16.msra.mxu0 0
    %814 = vmatpush.bf16.msra.mxu0 %v802
    %815 = vmatpush.bf16.msra.mxu0 %v801
    %816 = vmatmul.bf16.gmra.mxu0 %v806
    %v817 = vpop.f32.mrf.mxu0
    %v818 = vadd.f32 %v791, %v817
    %v819 = vpop.f32.mrf.mxu0
    %v820 = vadd.f32 %v791, %v819
    %821 = vdwg.mxu0
    %v822 = vmul.f32 %v818, 0.5
    %v823 = vmul.f32 %v820, 0.5
    %v824 = vmul.f32 %v818, 0.044715
    %v825 = vmul.f32 %v820, 0.044715
    %v826 = vmul.f32 %v824, %v818
    %v827 = vmul.f32 %v825, %v820
    %v828 = vmul.f32 %v826, %v818
    %v829 = vmul.f32 %v827, %v820
    %v830 = vadd.f32 %v818, %v828
    %v831 = vadd.f32 %v820, %v829
    %v832 = vmul.f32 %v830, 0.7978846
    %v833 = vmul.f32 %v831, 0.7978846
    %v834 = vtanh.pop %v832
    %v835 = vtanh.pop %v833
    %v836 = vadd.f32 %v834, 1.0
    %v837 = vadd.f32 %v835, 1.0
    %v838 = vmul.f32 %v822, %v836
    %v839 = vmul.f32 %v823, %v837
    %v840 = vpack.c.bf16 %v839, %v838
    %v841 = vld [vmem:[%s11] sm:$0xf]
    %v842 = vld [vmem:[%s11 + $0x4] sm:$0xf]
    %v843 = vld [vmem:[%s11 + $0x8] sm:$0xf]
    %v844 = vld [vmem:[%s11 + $0xc] sm:$0xf]
    %v845 = vld [vmem:[%s12] sm:$0x1]
    %v847 = vperm.slane %v845, 0
    %v853 = vunpack.c.l.b16 %v841
    %v854 = vunpack.c.l.b16 %v842
    %v855 = vunpack.c.l.b16 %v843
    %v856 = vunpack.c.l.b16 %v844
    %v857 = vpack.c.b16 %v854, %v853
    %v858 = vpack.c.b16 %v856, %v855
    %v862 = vsel %vm64, %v840, 0
    %864 = vmatpush.bf16.msra.mxu0 0
    %865 = vmatpush.bf16.msra.mxu0 0
    %866 = vmatpush.bf16.msra.mxu0 0
    %867 = vmatpush.bf16.msra.mxu0 0
    %868 = vmatpush.bf16.msra.mxu0 0
    %869 = vmatpush.bf16.msra.mxu0 0
    %870 = vmatpush.bf16.msra.mxu0 %v858
    %871 = vmatpush.bf16.msra.mxu0 %v857
    %872 = vmatmul.bf16.gmra.mxu0 %v862
    %v873 = vpop.f32.mrf.mxu0
    %v874 = vadd.f32 %v847, %v873
    %v875 = vpop.f32.mrf.mxu0
    %v876 = vadd.f32 %v847, %v875
    %877 = vdwg.mxu0
    %v878 = vadd.f32 %v726, %v874
    %v879 = vadd.f32 %v727, %v876
    %s880 = scalar_lea.vmem %s1, 1
    %v881 = vld [vmem:[%s880] sm:$0x1]
    %s882 = scalar_lea.vmem %s2, 1
    %v883 = vld [vmem:[%s882] sm:$0x1]
    %v884 = vsel %vm64, %v878, 0.0
    %885 = vadd.xlane.f32.xlu0 %v884
    %v886 = vpop.xlane.xlu0 %885
    %v887 = vsel %vm64, %v879, 0.0
    %888 = vadd.xlane.f32.xlu0 %v887
    %v889 = vpop.xlane.xlu0 %888
    %v890 = vmul.f32 %v886, %v77
    %v891 = vmul.f32 %v889, %v77
    %v892 = vsub.f32 %v878, %v890
    %v893 = vsub.f32 %v879, %v891
    %v894 = vmul.f32 %v892, %v892
    %v895 = vmul.f32 %v893, %v893
    %v896 = vsel %vm64, %v894, 0.0
    %897 = vadd.xlane.f32.xlu0 %v896
    %v898 = vpop.xlane.xlu0 %897
    %v899 = vsel %vm64, %v895, 0.0
    %900 = vadd.xlane.f32.xlu0 %v899
    %v901 = vpop.xlane.xlu0 %900
    %v902 = vmul.f32 %v898, %v77
    %v903 = vmul.f32 %v901, %v77
    %v904 = vadd.f32 %v902, 1e-05
    %v905 = vadd.f32 %v903, 1e-05
    %v906 = vrsqrt.pop %v904
    %v907 = vmul.f32 %v906, %v904
    %v908 = vmul.f32 %v907, %v906
    %v909 = vmul.f32 0.5, %v908
    %v910 = vsub.f32 1.5, %v909
    %v911 = vmul.f32 %v906, %v910
    %vm912 = vweird.f32 %v904
    %vm913 = vweird.f32 %v906
    %vm914 = vmor %vm912, %vm913
    %v915 = vsel %vm914, %v906, %v911
    %v916 = vrsqrt.pop %v905
    %v917 = vmul.f32 %v916, %v905
    %v918 = vmul.f32 %v917, %v916
    %v919 = vmul.f32 0.5, %v918
    %v920 = vsub.f32 1.5, %v919
    %v921 = vmul.f32 %v916, %v920
    %vm922 = vweird.f32 %v905
    %vm923 = vweird.f32 %v916
    %vm924 = vmor %vm922, %vm923
    %v925 = vsel %vm924, %v916, %v921
    %v926 = vmul.f32 %v892, %v915
    %v927 = vmul.f32 %v893, %v925
    %v929 = vperm.slane %v881, 0
    %v931 = vmul.f32 %v926, %v929
    %v932 = vmul.f32 %v927, %v929
    %v934 = vperm.slane %v883, 0
    %v936 = vadd.f32 %v931, %v934
    %v937 = vadd.f32 %v932, %v934
    %v938 = vpack.c.bf16 %v937, %v936
    %s939 = scalar_lea.vmem %s3, 16
    %v940 = vld [vmem:[%s939] sm:$0xf]
    %v941 = vld [vmem:[%s939 + $0x4] sm:$0xf]
    %v942 = vld [vmem:[%s939 + $0x8] sm:$0xf]
    %v943 = vld [vmem:[%s939 + $0xc] sm:$0xf]
    %s944 = scalar_lea.vmem %s4, 1
    %v945 = vld [vmem:[%s944] sm:$0x1]
    %v947 = vperm.slane %v945, 0
    %v953 = vunpack.c.l.b16 %v940
    %v954 = vunpack.c.l.b16 %v941
    %v955 = vunpack.c.l.b16 %v942
    %v956 = vunpack.c.l.b16 %v943
    %v957 = vpack.c.b16 %v954, %v953
    %v958 = vpack.c.b16 %v956, %v955
    %v962 = vsel %vm64, %v938, 0
    %964 = vmatpush.bf16.msra.mxu0 0
    %965 = vmatpush.bf16.msra.mxu0 0
    %966 = vmatpush.bf16.msra.mxu0 0
    %967 = vmatpush.bf16.msra.mxu0 0
    %968 = vmatpush.bf16.msra.mxu0 0
    %969 = vmatpush.bf16.msra.mxu0 0
    %970 = vmatpush.bf16.msra.mxu0 %v958
    %971 = vmatpush.bf16.msra.mxu0 %v957
    %972 = vmatmul.bf16.gmra.mxu0 %v962
    %v973 = vpop.f32.mrf.mxu0
    %v974 = vadd.f32 %v947, %v973
    %v975 = vpop.f32.mrf.mxu0
    %v976 = vadd.f32 %v947, %v975
    %977 = vdwg.mxu0
    %s978 = scalar_lea.vmem %s5, 16
    %v979 = vld [vmem:[%s978] sm:$0xf]
    %v980 = vld [vmem:[%s978 + $0x4] sm:$0xf]
    %v981 = vld [vmem:[%s978 + $0x8] sm:$0xf]
    %v982 = vld [vmem:[%s978 + $0xc] sm:$0xf]
    %v983 = vpack.c.bf16 %v974, %v974
    %v984 = vpack.c.bf16 %v976, %v976
    %v986 = vunpack.c.l.b16 %v983
    %v987 = vpack.c.b16 %v986, %v986
    %988 = vrot.lane.b32.xlu0 %v987, 96
    %v989 = vpop.permute.xlu0 %988
    %v991 = vsel %vm175, %v983, 0
    %v994 = vsel %vm175, %v989, 0
    %996 = vmatpush.bf16.xpose.msra.mxu0 0
    %997 = vmatpush.bf16.xpose.msra.mxu0 0
    %998 = vmatpush.bf16.xpose.msra.mxu0 0
    %999 = vmatpush.bf16.xpose.msra.mxu0 0
    %1000 = vmatpush.bf16.xpose.msra.mxu0 0
    %1001 = vmatpush.bf16.xpose.msra.mxu0 0
    %1002 = vmatpush.bf16.xpose.msra.mxu0 0
    %1003 = vmatpush.bf16.xpose.msra.mxu0 %v994
    %1004 = vmatmul.bf16.gmra.mxu0 %v991
    %v1005 = vpop.f32.mrf.mxu0
    %v1006 = vadd.f32 0.0, %v1005
    %v1007 = vpop.f32.mrf.mxu0
    %1008 = vdwg.mxu0
    %v1010 = vunpack.c.l.b16 %v984
    %v1011 = vpack.c.b16 %v1010, %v1010
    %1012 = vrot.lane.b32.xlu0 %v1011, 96
    %v1013 = vpop.permute.xlu0 %1012
    %v1015 = vsel %vm175, %v984, 0
    %v1018 = vsel %vm175, %v1013, 0
    %1020 = vmatpush.bf16.xpose.msra.mxu0 0
    %1021 = vmatpush.bf16.xpose.msra.mxu0 0
    %1022 = vmatpush.bf16.xpose.msra.mxu0 0
    %1023 = vmatpush.bf16.xpose.msra.mxu0 0
    %1024 = vmatpush.bf16.xpose.msra.mxu0 0
    %1025 = vmatpush.bf16.xpose.msra.mxu0 0
    %1026 = vmatpush.bf16.xpose.msra.mxu0 0
    %1027 = vmatpush.bf16.xpose.msra.mxu0 %v1018
    %1028 = vmatmul.bf16.gmra.mxu0 %v1015
    %v1029 = vpop.f32.mrf.mxu0
    %v1030 = vadd.f32 0.0, %v1029
    %v1031 = vpop.f32.mrf.mxu0
    %1032 = vdwg.mxu0
    %v1033 = vsel %vm220, %v1006, -3.4028235e+38
    %v1034 = vsel %vm220, %v1030, -3.4028235e+38
    %v1035 = vsel %vm175, %v1033, -inf
    %1036 = vmax.xlane.f32.xlu0 %v1035
    %v1037 = vpop.xlane.xlu0 %1036
    %v1038 = vsel %vm175, %v1034, -inf
    %1039 = vmax.xlane.f32.xlu0 %v1038
    %v1040 = vpop.xlane.xlu0 %1039
    %v1041 = vsub.f32 %v1033, %v1037
    %v1042 = vsub.f32 %v1034, %v1040
    %v1043 = vmul.f32 %v1041, 1.442695
    %v1044 = vpow.pop %v1043
    %v1045 = vmul.f32 %v1042, 1.442695
    %v1046 = vpow.pop %v1045
    %v1047 = vsel %vm175, %v1044, 0.0
    %1048 = vadd.xlane.f32.xlu0 %v1047
    %v1049 = vpop.xlane.xlu0 %1048
    %v1050 = vsel %vm175, %v1046, 0.0
    %1051 = vadd.xlane.f32.xlu0 %v1050
    %v1052 = vpop.xlane.xlu0 %1051
    %v1053 = vrcp.pop %v1049
    %v1054 = vrcp.pop %v1052
    %v1055 = vmul.f32 %v1044, %v1053
    %v1056 = vmul.f32 %v1046, %v1054
    %v1057 = vpack.c.bf16 %v1055, %v1055
    %v1058 = vpack.c.bf16 %v1056, %v1056
    %1059 = vrot.lane.b32.xlu0 %v987, 64
    %v1060 = vpop.permute.xlu0 %1059
    %v1062 = vsel %vm175, %v1057, 0
    %v1065 = vsel %vm252, %v1060, 0
    %1067 = vmatpush.bf16.msra.mxu0 0
    %1068 = vmatpush.bf16.msra.mxu0 0
    %1069 = vmatpush.bf16.msra.mxu0 0
    %1070 = vmatpush.bf16.msra.mxu0 0
    %1071 = vmatpush.bf16.msra.mxu0 0
    %1072 = vmatpush.bf16.msra.mxu0 0
    %1073 = vmatpush.bf16.msra.mxu0 0
    %1074 = vmatpush.bf16.msra.mxu0 %v1065
    %1075 = vmatmul.bf16.gmra.mxu0 %v1062
    %v1076 = vpop.f32.mrf.mxu0
    %v1077 = vadd.f32 0.0, %v1076
    %v1078 = vpop.f32.mrf.mxu0
    %1079 = vdwg.mxu0
    %1080 = vrot.lane.b32.xlu0 %v1011, 64
    %v1081 = vpop.permute.xlu0 %1080
    %v1083 = vsel %vm175, %v1058, 0
    %v1086 = vsel %vm252, %v1081, 0
    %1088 = vmatpush.bf16.msra.mxu0 0
    %1089 = vmatpush.bf16.msra.mxu0 0
    %1090 = vmatpush.bf16.msra.mxu0 0
    %1091 = vmatpush.bf16.msra.mxu0 0
    %1092 = vmatpush.bf16.msra.mxu0 0
    %1093 = vmatpush.bf16.msra.mxu0 0
    %1094 = vmatpush.bf16.msra.mxu0 0
    %1095 = vmatpush.bf16.msra.mxu0 %v1086
    %1096 = vmatmul.bf16.gmra.mxu0 %v1083
    %v1097 = vpop.f32.mrf.mxu0
    %v1098 = vadd.f32 0.0, %v1097
    %v1099 = vpop.f32.mrf.mxu0
    %1100 = vdwg.mxu0
    %v1101 = vpack.c.bf16 %v1098, %v1077
    %1102 = vrot.lane.b32.xlu0 %v987, 120
    %v1103 = vpop.permute.xlu0 %1102
    %1104 = vrot.lane.b32.xlu0 %v987, 88
    %v1105 = vpop.permute.xlu0 %1104
    %v1107 = vsel %vm175, %v1103, 0
    %v1110 = vsel %vm175, %v1105, 0
    %1112 = vmatpush.bf16.xpose.msra.mxu0 0
    %1113 = vmatpush.bf16.xpose.msra.mxu0 0
    %1114 = vmatpush.bf16.xpose.msra.mxu0 0
    %1115 = vmatpush.bf16.xpose.msra.mxu0 0
    %1116 = vmatpush.bf16.xpose.msra.mxu0 0
    %1117 = vmatpush.bf16.xpose.msra.mxu0 0
    %1118 = vmatpush.bf16.xpose.msra.mxu0 0
    %1119 = vmatpush.bf16.xpose.msra.mxu0 %v1110
    %1120 = vmatmul.bf16.gmra.mxu0 %v1107
    %v1121 = vpop.f32.mrf.mxu0
    %v1122 = vadd.f32 0.0, %v1121
    %v1123 = vpop.f32.mrf.mxu0
    %1124 = vdwg.mxu0
    %1125 = vrot.lane.b32.xlu0 %v1011, 120
    %v1126 = vpop.permute.xlu0 %1125
    %1127 = vrot.lane.b32.xlu0 %v1011, 88
    %v1128 = vpop.permute.xlu0 %1127
    %v1130 = vsel %vm175, %v1126, 0
    %v1133 = vsel %vm175, %v1128, 0
    %1135 = vmatpush.bf16.xpose.msra.mxu0 0
    %1136 = vmatpush.bf16.xpose.msra.mxu0 0
    %1137 = vmatpush.bf16.xpose.msra.mxu0 0
    %1138 = vmatpush.bf16.xpose.msra.mxu0 0
    %1139 = vmatpush.bf16.xpose.msra.mxu0 0
    %1140 = vmatpush.bf16.xpose.msra.mxu0 0
    %1141 = vmatpush.bf16.xpose.msra.mxu0 0
    %1142 = vmatpush.bf16.xpose.msra.mxu0 %v1133
    %1143 = vmatmul.bf16.gmra.mxu0 %v1130
    %v1144 = vpop.f32.mrf.mxu0
    %v1145 = vadd.f32 0.0, %v1144
    %v1146 = vpop.f32.mrf.mxu0
    %1147 = vdwg.mxu0
    %v1148 = vsel %vm220, %v1122, -3.4028235e+38
    %v1149 = vsel %vm220, %v1145, -3.4028235e+38
    %v1150 = vsel %vm175, %v1148, -inf
    %1151 = vmax.xlane.f32.xlu0 %v1150
    %v1152 = vpop.xlane.xlu0 %1151
    %v1153 = vsel %vm175, %v1149, -inf
    %1154 = vmax.xlane.f32.xlu0 %v1153
    %v1155 = vpop.xlane.xlu0 %1154
    %v1156 = vsub.f32 %v1148, %v1152
    %v1157 = vsub.f32 %v1149, %v1155
    %v1158 = vmul.f32 %v1156, 1.442695
    %v1159 = vpow.pop %v1158
    %v1160 = vmul.f32 %v1157, 1.442695
    %v1161 = vpow.pop %v1160
    %v1162 = vsel %vm175, %v1159, 0.0
    %1163 = vadd.xlane.f32.xlu0 %v1162
    %v1164 = vpop.xlane.xlu0 %1163
    %v1165 = vsel %vm175, %v1161, 0.0
    %1166 = vadd.xlane.f32.xlu0 %v1165
    %v1167 = vpop.xlane.xlu0 %1166
    %v1168 = vrcp.pop %v1164
    %v1169 = vrcp.pop %v1167
    %v1170 = vmul.f32 %v1159, %v1168
    %v1171 = vmul.f32 %v1161, %v1169
    %v1172 = vpack.c.bf16 %v1170, %v1170
    %v1173 = vpack.c.bf16 %v1171, %v1171
    %1174 = vrot.lane.b32.xlu0 %v987, 56
    %v1175 = vpop.permute.xlu0 %1174
    %v1177 = vsel %vm175, %v1172, 0
    %v1180 = vsel %vm252, %v1175, 0
    %1182 = vmatpush.bf16.msra.mxu0 0
    %1183 = vmatpush.bf16.msra.mxu0 0
    %1184 = vmatpush.bf16.msra.mxu0 0
    %1185 = vmatpush.bf16.msra.mxu0 0
    %1186 = vmatpush.bf16.msra.mxu0 0
    %1187 = vmatpush.bf16.msra.mxu0 0
    %1188 = vmatpush.bf16.msra.mxu0 0
    %1189 = vmatpush.bf16.msra.mxu0 %v1180
    %1190 = vmatmul.bf16.gmra.mxu0 %v1177
    %v1191 = vpop.f32.mrf.mxu0
    %v1192 = vadd.f32 0.0, %v1191
    %v1193 = vpop.f32.mrf.mxu0
    %1194 = vdwg.mxu0
    %1195 = vrot.lane.b32.xlu0 %v1011, 56
    %v1196 = vpop.permute.xlu0 %1195
    %v1198 = vsel %vm175, %v1173, 0
    %v1201 = vsel %vm252, %v1196, 0
    %1203 = vmatpush.bf16.msra.mxu0 0
    %1204 = vmatpush.bf16.msra.mxu0 0
    %1205 = vmatpush.bf16.msra.mxu0 0
    %1206 = vmatpush.bf16.msra.mxu0 0
    %1207 = vmatpush.bf16.msra.mxu0 0
    %1208 = vmatpush.bf16.msra.mxu0 0
    %1209 = vmatpush.bf16.msra.mxu0 0
    %1210 = vmatpush.bf16.msra.mxu0 %v1201
    %1211 = vmatmul.bf16.gmra.mxu0 %v1198
    %v1212 = vpop.f32.mrf.mxu0
    %v1213 = vadd.f32 0.0, %v1212
    %v1214 = vpop.f32.mrf.mxu0
    %1215 = vdwg.mxu0
    %v1216 = vpack.c.bf16 %v1213, %v1192
    %v1218 = vsel %vm175, %v1216, 0
    %v1221 = vsel %vm252, %v980, 0
    %1223 = vmatpush.bf16.msra.mxu0 0
    %1224 = vmatpush.bf16.msra.mxu0 0
    %1225 = vmatpush.bf16.msra.mxu0 0
    %1226 = vmatpush.bf16.msra.mxu0 0
    %1227 = vmatpush.bf16.msra.mxu0 0
    %1228 = vmatpush.bf16.msra.mxu0 0
    %1229 = vmatpush.bf16.msra.mxu0 0
    %1230 = vmatpush.bf16.msra.mxu0 %v1221
    %1231 = vmatmul.bf16.gmra.mxu0 %v1218
    %v1232 = vpop.f32.mrf.mxu0
    %v1233 = vadd.f32 0.0, %v1232
    %v1234 = vpop.f32.mrf.mxu0
    %v1235 = vadd.f32 0.0, %v1234
    %1236 = vdwg.mxu0
    %v1238 = vsel %vm175, %v1101, 0
    %v1241 = vsel %vm252, %v979, 0
    %1243 = vmatpush.bf16.msra.mxu0 0
    %1244 = vmatpush.bf16.msra.mxu0 0
    %1245 = vmatpush.bf16.msra.mxu0 0
    %1246 = vmatpush.bf16.msra.mxu0 0
    %1247 = vmatpush.bf16.msra.mxu0 0
    %1248 = vmatpush.bf16.msra.mxu0 0
    %1249 = vmatpush.bf16.msra.mxu0 0
    %1250 = vmatpush.bf16.msra.mxu0 %v1241
    %1251 = vmatmul.bf16.gmra.mxu0 %v1238
    %v1252 = vpop.f32.mrf.mxu0
    %v1253 = vadd.f32 %v1233, %v1252
    %v1254 = vpop.f32.mrf.mxu0
    %v1255 = vadd.f32 %v1235, %v1254
    %1256 = vdwg.mxu0
    %1257 = vrot.lane.b32.xlu0 %v987, 112
    %v1258 = vpop.permute.xlu0 %1257
    %1259 = vrot.lane.b32.xlu0 %v987, 80
    %v1260 = vpop.permute.xlu0 %1259
    %v1262 = vsel %vm175, %v1258, 0
    %v1265 = vsel %vm175, %v1260, 0
    %1267 = vmatpush.bf16.xpose.msra.mxu0 0
    %1268 = vmatpush.bf16.xpose.msra.mxu0 0
    %1269 = vmatpush.bf16.xpose.msra.mxu0 0
    %1270 = vmatpush.bf16.xpose.msra.mxu0 0
    %1271 = vmatpush.bf16.xpose.msra.mxu0 0
    %1272 = vmatpush.bf16.xpose.msra.mxu0 0
    %1273 = vmatpush.bf16.xpose.msra.mxu0 0
    %1274 = vmatpush.bf16.xpose.msra.mxu0 %v1265
    %1275 = vmatmul.bf16.gmra.mxu0 %v1262
    %v1276 = vpop.f32.mrf.mxu0
    %v1277 = vadd.f32 0.0, %v1276
    %v1278 = vpop.f32.mrf.mxu0
    %1279 = vdwg.mxu0
    %1280 = vrot.lane.b32.xlu0 %v1011, 112
    %v1281 = vpop.permute.xlu0 %1280
    %1282 = vrot.lane.b32.xlu0 %v1011, 80
    %v1283 = vpop.permute.xlu0 %1282
    %v1285 = vsel %vm175, %v1281, 0
    %v1288 = vsel %vm175, %v1283, 0
    %1290 = vmatpush.bf16.xpose.msra.mxu0 0
    %1291 = vmatpush.bf16.xpose.msra.mxu0 0
    %1292 = vmatpush.bf16.xpose.msra.mxu0 0
    %1293 = vmatpush.bf16.xpose.msra.mxu0 0
    %1294 = vmatpush.bf16.xpose.msra.mxu0 0
    %1295 = vmatpush.bf16.xpose.msra.mxu0 0
    %1296 = vmatpush.bf16.xpose.msra.mxu0 0
    %1297 = vmatpush.bf16.xpose.msra.mxu0 %v1288
    %1298 = vmatmul.bf16.gmra.mxu0 %v1285
    %v1299 = vpop.f32.mrf.mxu0
    %v1300 = vadd.f32 0.0, %v1299
    %v1301 = vpop.f32.mrf.mxu0
    %1302 = vdwg.mxu0
    %v1303 = vsel %vm220, %v1277, -3.4028235e+38
    %v1304 = vsel %vm220, %v1300, -3.4028235e+38
    %v1305 = vsel %vm175, %v1303, -inf
    %1306 = vmax.xlane.f32.xlu0 %v1305
    %v1307 = vpop.xlane.xlu0 %1306
    %v1308 = vsel %vm175, %v1304, -inf
    %1309 = vmax.xlane.f32.xlu0 %v1308
    %v1310 = vpop.xlane.xlu0 %1309
    %v1311 = vsub.f32 %v1303, %v1307
    %v1312 = vsub.f32 %v1304, %v1310
    %v1313 = vmul.f32 %v1311, 1.442695
    %v1314 = vpow.pop %v1313
    %v1315 = vmul.f32 %v1312, 1.442695
    %v1316 = vpow.pop %v1315
    %v1317 = vsel %vm175, %v1314, 0.0
    %1318 = vadd.xlane.f32.xlu0 %v1317
    %v1319 = vpop.xlane.xlu0 %1318
    %v1320 = vsel %vm175, %v1316, 0.0
    %1321 = vadd.xlane.f32.xlu0 %v1320
    %v1322 = vpop.xlane.xlu0 %1321
    %v1323 = vrcp.pop %v1319
    %v1324 = vrcp.pop %v1322
    %v1325 = vmul.f32 %v1314, %v1323
    %v1326 = vmul.f32 %v1316, %v1324
    %v1327 = vpack.c.bf16 %v1325, %v1325
    %v1328 = vpack.c.bf16 %v1326, %v1326
    %1329 = vrot.lane.b32.xlu0 %v987, 48
    %v1330 = vpop.permute.xlu0 %1329
    %v1332 = vsel %vm175, %v1327, 0
    %v1335 = vsel %vm252, %v1330, 0
    %1337 = vmatpush.bf16.msra.mxu0 0
    %1338 = vmatpush.bf16.msra.mxu0 0
    %1339 = vmatpush.bf16.msra.mxu0 0
    %1340 = vmatpush.bf16.msra.mxu0 0
    %1341 = vmatpush.bf16.msra.mxu0 0
    %1342 = vmatpush.bf16.msra.mxu0 0
    %1343 = vmatpush.bf16.msra.mxu0 0
    %1344 = vmatpush.bf16.msra.mxu0 %v1335
    %1345 = vmatmul.bf16.gmra.mxu0 %v1332
    %v1346 = vpop.f32.mrf.mxu0
    %v1347 = vadd.f32 0.0, %v1346
    %v1348 = vpop.f32.mrf.mxu0
    %1349 = vdwg.mxu0
    %1350 = vrot.lane.b32.xlu0 %v1011, 48
    %v1351 = vpop.permute.xlu0 %1350
    %v1353 = vsel %vm175, %v1328, 0
    %v1356 = vsel %vm252, %v1351, 0
    %1358 = vmatpush.bf16.msra.mxu0 0
    %1359 = vmatpush.bf16.msra.mxu0 0
    %1360 = vmatpush.bf16.msra.mxu0 0
    %1361 = vmatpush.bf16.msra.mxu0 0
    %1362 = vmatpush.bf16.msra.mxu0 0
    %1363 = vmatpush.bf16.msra.mxu0 0
    %1364 = vmatpush.bf16.msra.mxu0 0
    %1365 = vmatpush.bf16.msra.mxu0 %v1356
    %1366 = vmatmul.bf16.gmra.mxu0 %v1353
    %v1367 = vpop.f32.mrf.mxu0
    %v1368 = vadd.f32 0.0, %v1367
    %v1369 = vpop.f32.mrf.mxu0
    %1370 = vdwg.mxu0
    %v1371 = vpack.c.bf16 %v1368, %v1347
    %v1373 = vsel %vm175, %v1371, 0
    %v1376 = vsel %vm252, %v981, 0
    %1378 = vmatpush.bf16.msra.mxu0 0
    %1379 = vmatpush.bf16.msra.mxu0 0
    %1380 = vmatpush.bf16.msra.mxu0 0
    %1381 = vmatpush.bf16.msra.mxu0 0
    %1382 = vmatpush.bf16.msra.mxu0 0
    %1383 = vmatpush.bf16.msra.mxu0 0
    %1384 = vmatpush.bf16.msra.mxu0 0
    %1385 = vmatpush.bf16.msra.mxu0 %v1376
    %1386 = vmatmul.bf16.gmra.mxu0 %v1373
    %v1387 = vpop.f32.mrf.mxu0
    %v1388 = vadd.f32 0.0, %v1387
    %v1389 = vpop.f32.mrf.mxu0
    %v1390 = vadd.f32 0.0, %v1389
    %1391 = vdwg.mxu0
    %v1392 = vadd.f32 %v1253, %v1388
    %v1393 = vadd.f32 %v1255, %v1390
    %1394 = vrot.lane.b32.xlu0 %v987, 104
    %v1395 = vpop.permute.xlu0 %1394
    %1396 = vrot.lane.b32.xlu0 %v987, 72
    %v1397 = vpop.permute.xlu0 %1396
    %v1399 = vsel %vm175, %v1395, 0
    %v1402 = vsel %vm175, %v1397, 0
    %1404 = vmatpush.bf16.xpose.msra.mxu0 0
    %1405 = vmatpush.bf16.xpose.msra.mxu0 0
    %1406 = vmatpush.bf16.xpose.msra.mxu0 0
    %1407 = vmatpush.bf16.xpose.msra.mxu0 0
    %1408 = vmatpush.bf16.xpose.msra.mxu0 0
    %1409 = vmatpush.bf16.xpose.msra.mxu0 0
    %1410 = vmatpush.bf16.xpose.msra.mxu0 0
    %1411 = vmatpush.bf16.xpose.msra.mxu0 %v1402
    %1412 = vmatmul.bf16.gmra.mxu0 %v1399
    %v1413 = vpop.f32.mrf.mxu0
    %v1414 = vadd.f32 0.0, %v1413
    %v1415 = vpop.f32.mrf.mxu0
    %1416 = vdwg.mxu0
    %1417 = vrot.lane.b32.xlu0 %v1011, 104
    %v1418 = vpop.permute.xlu0 %1417
    %1419 = vrot.lane.b32.xlu0 %v1011, 72
    %v1420 = vpop.permute.xlu0 %1419
    %v1422 = vsel %vm175, %v1418, 0
    %v1425 = vsel %vm175, %v1420, 0
    %1427 = vmatpush.bf16.xpose.msra.mxu0 0
    %1428 = vmatpush.bf16.xpose.msra.mxu0 0
    %1429 = vmatpush.bf16.xpose.msra.mxu0 0
    %1430 = vmatpush.bf16.xpose.msra.mxu0 0
    %1431 = vmatpush.bf16.xpose.msra.mxu0 0
    %1432 = vmatpush.bf16.xpose.msra.mxu0 0
    %1433 = vmatpush.bf16.xpose.msra.mxu0 0
    %1434 = vmatpush.bf16.xpose.msra.mxu0 %v1425
    %1435 = vmatmul.bf16.gmra.mxu0 %v1422
    %v1436 = vpop.f32.mrf.mxu0
    %v1437 = vadd.f32 0.0, %v1436
    %v1438 = vpop.f32.mrf.mxu0
    %1439 = vdwg.mxu0
    %v1440 = vsel %vm220, %v1414, -3.4028235e+38
    %v1441 = vsel %vm220, %v1437, -3.4028235e+38
    %v1442 = vsel %vm175, %v1440, -inf
    %1443 = vmax.xlane.f32.xlu0 %v1442
    %v1444 = vpop.xlane.xlu0 %1443
    %v1445 = vsel %vm175, %v1441, -inf
    %1446 = vmax.xlane.f32.xlu0 %v1445
    %v1447 = vpop.xlane.xlu0 %1446
    %v1448 = vsub.f32 %v1440, %v1444
    %v1449 = vsub.f32 %v1441, %v1447
    %v1450 = vmul.f32 %v1448, 1.442695
    %v1451 = vpow.pop %v1450
    %v1452 = vmul.f32 %v1449, 1.442695
    %v1453 = vpow.pop %v1452
    %v1454 = vsel %vm175, %v1451, 0.0
    %1455 = vadd.xlane.f32.xlu0 %v1454
    %v1456 = vpop.xlane.xlu0 %1455
    %v1457 = vsel %vm175, %v1453, 0.0
    %1458 = vadd.xlane.f32.xlu0 %v1457
    %v1459 = vpop.xlane.xlu0 %1458
    %v1460 = vrcp.pop %v1456
    %v1461 = vrcp.pop %v1459
    %v1462 = vmul.f32 %v1451, %v1460
    %v1463 = vmul.f32 %v1453, %v1461
    %v1464 = vpack.c.bf16 %v1462, %v1462
    %v1465 = vpack.c.bf16 %v1463, %v1463
    %1466 = vrot.lane.b32.xlu0 %v987, 40
    %v1467 = vpop.permute.xlu0 %1466
    %v1469 = vsel %vm175, %v1464, 0
    %v1472 = vsel %vm252, %v1467, 0
    %1474 = vmatpush.bf16.msra.mxu0 0
    %1475 = vmatpush.bf16.msra.mxu0 0
    %1476 = vmatpush.bf16.msra.mxu0 0
    %1477 = vmatpush.bf16.msra.mxu0 0
    %1478 = vmatpush.bf16.msra.mxu0 0
    %1479 = vmatpush.bf16.msra.mxu0 0
    %1480 = vmatpush.bf16.msra.mxu0 0
    %1481 = vmatpush.bf16.msra.mxu0 %v1472
    %1482 = vmatmul.bf16.gmra.mxu0 %v1469
    %v1483 = vpop.f32.mrf.mxu0
    %v1484 = vadd.f32 0.0, %v1483
    %v1485 = vpop.f32.mrf.mxu0
    %1486 = vdwg.mxu0
    %1487 = vrot.lane.b32.xlu0 %v1011, 40
    %v1488 = vpop.permute.xlu0 %1487
    %v1490 = vsel %vm175, %v1465, 0
    %v1493 = vsel %vm252, %v1488, 0
    %1495 = vmatpush.bf16.msra.mxu0 0
    %1496 = vmatpush.bf16.msra.mxu0 0
    %1497 = vmatpush.bf16.msra.mxu0 0
    %1498 = vmatpush.bf16.msra.mxu0 0
    %1499 = vmatpush.bf16.msra.mxu0 0
    %1500 = vmatpush.bf16.msra.mxu0 0
    %1501 = vmatpush.bf16.msra.mxu0 0
    %1502 = vmatpush.bf16.msra.mxu0 %v1493
    %1503 = vmatmul.bf16.gmra.mxu0 %v1490
    %v1504 = vpop.f32.mrf.mxu0
    %v1505 = vadd.f32 0.0, %v1504
    %v1506 = vpop.f32.mrf.mxu0
    %1507 = vdwg.mxu0
    %v1508 = vpack.c.bf16 %v1505, %v1484
    %v1510 = vsel %vm175, %v1508, 0
    %v1513 = vsel %vm252, %v982, 0
    %1515 = vmatpush.bf16.msra.mxu0 0
    %1516 = vmatpush.bf16.msra.mxu0 0
    %1517 = vmatpush.bf16.msra.mxu0 0
    %1518 = vmatpush.bf16.msra.mxu0 0
    %1519 = vmatpush.bf16.msra.mxu0 0
    %1520 = vmatpush.bf16.msra.mxu0 0
    %1521 = vmatpush.bf16.msra.mxu0 0
    %1522 = vmatpush.bf16.msra.mxu0 %v1513
    %1523 = vmatmul.bf16.gmra.mxu0 %v1510
    %v1524 = vpop.f32.mrf.mxu0
    %v1525 = vadd.f32 0.0, %v1524
    %v1526 = vpop.f32.mrf.mxu0
    %v1527 = vadd.f32 0.0, %v1526
    %1528 = vdwg.mxu0
    %v1529 = vadd.f32 %v1392, %v1525
    %v1530 = vadd.f32 %v1393, %v1527
    %v1531 = vadd.f32 %v878, %v1529
    %v1532 = vadd.f32 %v879, %v1530
    %s1533 = scalar_lea.vmem %s6, 1
    %v1534 = vld [vmem:[%s1533] sm:$0x1]
    %v1536 = vperm.slane %v1534, 0
    %v1538 = vadd.f32 %v1531, %v1536
    %v1539 = vadd.f32 %v1532, %v1536
    %s1540 = scalar_lea.vmem %s7, 1
    %v1541 = vld [vmem:[%s1540] sm:$0x1]
    %s1542 = scalar_lea.vmem %s8, 1
    %v1543 = vld [vmem:[%s1542] sm:$0x1]
    %v1544 = vsel %vm64, %v1538, 0.0
    %1545 = vadd.xlane.f32.xlu0 %v1544
    %v1546 = vpop.xlane.xlu0 %1545
    %v1547 = vsel %vm64, %v1539, 0.0
    %1548 = vadd.xlane.f32.xlu0 %v1547
    %v1549 = vpop.xlane.xlu0 %1548
    %v1550 = vmul.f32 %v1546, %v77
    %v1551 = vmul.f32 %v1549, %v77
    %v1552 = vsub.f32 %v1538, %v1550
    %v1553 = vsub.f32 %v1539, %v1551
    %v1554 = vmul.f32 %v1552, %v1552
    %v1555 = vmul.f32 %v1553, %v1553
    %v1556 = vsel %vm64, %v1554, 0.0
    %1557 = vadd.xlane.f32.xlu0 %v1556
    %v1558 = vpop.xlane.xlu0 %1557
    %v1559 = vsel %vm64, %v1555, 0.0
    %1560 = vadd.xlane.f32.xlu0 %v1559
    %v1561 = vpop.xlane.xlu0 %1560
    %v1562 = vmul.f32 %v1558, %v77
    %v1563 = vmul.f32 %v1561, %v77
    %v1564 = vadd.f32 %v1562, 1e-05
    %v1565 = vadd.f32 %v1563, 1e-05
    %v1566 = vrsqrt.pop %v1564
    %v1567 = vmul.f32 %v1566, %v1564
    %v1568 = vmul.f32 %v1567, %v1566
    %v1569 = vmul.f32 0.5, %v1568
    %v1570 = vsub.f32 1.5, %v1569
    %v1571 = vmul.f32 %v1566, %v1570
    %vm1572 = vweird.f32 %v1564
    %vm1573 = vweird.f32 %v1566
    %vm1574 = vmor %vm1572, %vm1573
    %v1575 = vsel %vm1574, %v1566, %v1571
    %v1576 = vrsqrt.pop %v1565
    %v1577 = vmul.f32 %v1576, %v1565
    %v1578 = vmul.f32 %v1577, %v1576
    %v1579 = vmul.f32 0.5, %v1578
    %v1580 = vsub.f32 1.5, %v1579
    %v1581 = vmul.f32 %v1576, %v1580
    %vm1582 = vweird.f32 %v1565
    %vm1583 = vweird.f32 %v1576
    %vm1584 = vmor %vm1582, %vm1583
    %v1585 = vsel %vm1584, %v1576, %v1581
    %v1586 = vmul.f32 %v1552, %v1575
    %v1587 = vmul.f32 %v1553, %v1585
    %v1589 = vperm.slane %v1541, 0
    %v1591 = vmul.f32 %v1586, %v1589
    %v1592 = vmul.f32 %v1587, %v1589
    %v1594 = vperm.slane %v1543, 0
    %v1596 = vadd.f32 %v1591, %v1594
    %v1597 = vadd.f32 %v1592, %v1594
    %v1598 = vpack.c.bf16 %v1597, %v1596
    %s1599 = scalar_lea.vmem %s9, 16
    %v1600 = vld [vmem:[%s1599] sm:$0xf]
    %v1601 = vld [vmem:[%s1599 + $0x4] sm:$0xf]
    %v1602 = vld [vmem:[%s1599 + $0x8] sm:$0xf]
    %v1603 = vld [vmem:[%s1599 + $0xc] sm:$0xf]
    %s1604 = scalar_lea.vmem %s10, 1
    %v1605 = vld [vmem:[%s1604] sm:$0x1]
    %v1607 = vperm.slane %v1605, 0
    %v1613 = vunpack.c.l.b16 %v1600
    %v1614 = vunpack.c.l.b16 %v1601
    %v1615 = vunpack.c.l.b16 %v1602
    %v1616 = vunpack.c.l.b16 %v1603
    %v1617 = vpack.c.b16 %v1614, %v1613
    %v1618 = vpack.c.b16 %v1616, %v1615
    %v1622 = vsel %vm64, %v1598, 0
    %1624 = vmatpush.bf16.msra.mxu0 0
    %1625 = vmatpush.bf16.msra.mxu0 0
    %1626 = vmatpush.bf16.msra.mxu0 0
    %1627 = vmatpush.bf16.msra.mxu0 0
    %1628 = vmatpush.bf16.msra.mxu0 0
    %1629 = vmatpush.bf16.msra.mxu0 0
    %1630 = vmatpush.bf16.msra.mxu0 %v1618
    %1631 = vmatpush.bf16.msra.mxu0 %v1617
    %1632 = vmatmul.bf16.gmra.mxu0 %v1622
    %v1633 = vpop.f32.mrf.mxu0
    %v1634 = vadd.f32 %v1607, %v1633
    %v1635 = vpop.f32.mrf.mxu0
    %v1636 = vadd.f32 %v1607, %v1635
    %1637 = vdwg.mxu0
    %v1638 = vmul.f32 %v1634, 0.5
    %v1639 = vmul.f32 %v1636, 0.5
    %v1640 = vmul.f32 %v1634, 0.044715
    %v1641 = vmul.f32 %v1636, 0.044715
    %v1642 = vmul.f32 %v1640, %v1634
    %v1643 = vmul.f32 %v1641, %v1636
    %v1644 = vmul.f32 %v1642, %v1634
    %v1645 = vmul.f32 %v1643, %v1636
    %v1646 = vadd.f32 %v1634, %v1644
    %v1647 = vadd.f32 %v1636, %v1645
    %v1648 = vmul.f32 %v1646, 0.7978846
    %v1649 = vmul.f32 %v1647, 0.7978846
    %v1650 = vtanh.pop %v1648
    %v1651 = vtanh.pop %v1649
    %v1652 = vadd.f32 %v1650, 1.0
    %v1653 = vadd.f32 %v1651, 1.0
    %v1654 = vmul.f32 %v1638, %v1652
    %v1655 = vmul.f32 %v1639, %v1653
    %v1656 = vpack.c.bf16 %v1655, %v1654
    %s1657 = scalar_lea.vmem %s11, 16
    %v1658 = vld [vmem:[%s1657] sm:$0xf]
    %v1659 = vld [vmem:[%s1657 + $0x4] sm:$0xf]
    %v1660 = vld [vmem:[%s1657 + $0x8] sm:$0xf]
    %v1661 = vld [vmem:[%s1657 + $0xc] sm:$0xf]
    %s1662 = scalar_lea.vmem %s12, 1
    %v1663 = vld [vmem:[%s1662] sm:$0x1]
    %v1665 = vperm.slane %v1663, 0
    %v1671 = vunpack.c.l.b16 %v1658
    %v1672 = vunpack.c.l.b16 %v1659
    %v1673 = vunpack.c.l.b16 %v1660
    %v1674 = vunpack.c.l.b16 %v1661
    %v1675 = vpack.c.b16 %v1672, %v1671
    %v1676 = vpack.c.b16 %v1674, %v1673
    %v1680 = vsel %vm64, %v1656, 0
    %1682 = vmatpush.bf16.msra.mxu0 0
    %1683 = vmatpush.bf16.msra.mxu0 0
    %1684 = vmatpush.bf16.msra.mxu0 0
    %1685 = vmatpush.bf16.msra.mxu0 0
    %1686 = vmatpush.bf16.msra.mxu0 0
    %1687 = vmatpush.bf16.msra.mxu0 0
    %1688 = vmatpush.bf16.msra.mxu0 %v1676
    %1689 = vmatpush.bf16.msra.mxu0 %v1675
    %1690 = vmatmul.bf16.gmra.mxu0 %v1680
    %v1691 = vpop.f32.mrf.mxu0
    %v1692 = vadd.f32 %v1665, %v1691
    %v1693 = vpop.f32.mrf.mxu0
    %v1694 = vadd.f32 %v1665, %v1693
    %1695 = vdwg.mxu0
    %v1696 = vadd.f32 %v1538, %v1692
    %v1697 = vadd.f32 %v1539, %v1694
    %v1698 = vld [vmem:[%s13] sm:$0x1]
    %v1699 = vld [vmem:[%s14] sm:$0x1]
    %v1700 = vsel %vm64, %v1696, 0.0
    %1701 = vadd.xlane.f32.xlu0 %v1700
    %v1702 = vpop.xlane.xlu0 %1701
    %v1703 = vsel %vm64, %v1697, 0.0
    %1704 = vadd.xlane.f32.xlu0 %v1703
    %v1705 = vpop.xlane.xlu0 %1704
    %v1706 = vmul.f32 %v1702, %v77
    %v1707 = vmul.f32 %v1705, %v77
    %v1708 = vsub.f32 %v1696, %v1706
    %v1709 = vsub.f32 %v1697, %v1707
    %v1710 = vmul.f32 %v1708, %v1708
    %v1711 = vmul.f32 %v1709, %v1709
    %v1712 = vsel %vm64, %v1710, 0.0
    %1713 = vadd.xlane.f32.xlu0 %v1712
    %v1714 = vpop.xlane.xlu0 %1713
    %v1715 = vsel %vm64, %v1711, 0.0
    %1716 = vadd.xlane.f32.xlu0 %v1715
    %v1717 = vpop.xlane.xlu0 %1716
    %v1718 = vmul.f32 %v1714, %v77
    %v1719 = vmul.f32 %v1717, %v77
    %v1720 = vadd.f32 %v1718, 1e-05
    %v1721 = vadd.f32 %v1719, 1e-05
    %v1722 = vrsqrt.pop %v1720
    %v1723 = vmul.f32 %v1722, %v1720
    %v1724 = vmul.f32 %v1723, %v1722
    %v1725 = vmul.f32 0.5, %v1724
    %v1726 = vsub.f32 1.5, %v1725
    %v1727 = vmul.f32 %v1722, %v1726
    %vm1728 = vweird.f32 %v1720
    %vm1729 = vweird.f32 %v1722
    %vm1730 = vmor %vm1728, %vm1729
    %v1731 = vsel %vm1730, %v1722, %v1727
    %v1732 = vrsqrt.pop %v1721
    %v1733 = vmul.f32 %v1732, %v1721
    %v1734 = vmul.f32 %v1733, %v1732
    %v1735 = vmul.f32 0.5, %v1734
    %v1736 = vsub.f32 1.5, %v1735
    %v1737 = vmul.f32 %v1732, %v1736
    %vm1738 = vweird.f32 %v1721
    %vm1739 = vweird.f32 %v1732
    %vm1740 = vmor %vm1738, %vm1739
    %v1741 = vsel %vm1740, %v1732, %v1737
    %v1742 = vmul.f32 %v1708, %v1731
    %v1743 = vmul.f32 %v1709, %v1741
    %v1745 = vperm.slane %v1698, 0
    %v1747 = vmul.f32 %v1742, %v1745
    %v1748 = vmul.f32 %v1743, %v1745
    %v1750 = vperm.slane %v1699, 0
    %v1752 = vadd.f32 %v1747, %v1750
    %v1753 = vadd.f32 %v1748, %v1750
    %v1754 = vpack.c.bf16 %v1753, %v1752
    %v1755 = vld [vmem:[%s15] sm:$0xf]
    %v1756 = vld [vmem:[%s15 + $0x4] sm:$0xf]
    %v1757 = vld [vmem:[%s15 + $0x8] sm:$0xf]
    %v1758 = vld [vmem:[%s15 + $0xc] sm:$0xf]
    %v1763 = vunpack.c.l.b16 %v1755
    %v1764 = vunpack.c.l.b16 %v1756
    %v1765 = vunpack.c.l.b16 %v1757
    %v1766 = vunpack.c.l.b16 %v1758
    %v1767 = vpack.c.b16 %v1764, %v1763
    %v1768 = vpack.c.b16 %v1766, %v1765
    %v1772 = vsel %vm64, %v1754, 0
    %1774 = vmatpush.bf16.msra.mxu0 0
    %1775 = vmatpush.bf16.msra.mxu0 0
    %1776 = vmatpush.bf16.msra.mxu0 0
    %1777 = vmatpush.bf16.msra.mxu0 0
    %1778 = vmatpush.bf16.msra.mxu0 0
    %1779 = vmatpush.bf16.msra.mxu0 0
    %1780 = vmatpush.bf16.msra.mxu0 %v1768
    %1781 = vmatpush.bf16.msra.mxu0 %v1767
    %1782 = vmatmul.bf16.gmra.mxu0 %v1772
    %v1783 = vpop.f32.mrf.mxu0
    %v1784 = vadd.f32 0.0, %v1783
    %v1785 = vpop.f32.mrf.mxu0
    %v1786 = vadd.f32 0.0, %v1785
    %1787 = vdwg.mxu0
    %vm1788 = vcmask 523264
    %1789 = vst.msk [vmem:[#allocation2] sm:$0xff] %vm1788, %v1784
    %1790 = vst.msk [vmem:[#allocation2 + $0x8] sm:$0xff] %vm1788, %v1786
    // Predicated region
    $region66: #{my_transformer_forward.1} parent=1 // pred_check
      _
    $region67: #{my_transformer_forward.1} parent=1 // pred_check_branch
      %1792 = sbr.rel (0) target = $region69
    $region68: #{my_transformer_forward.1} parent=1 // pred_region
      %1794 = vsyncadd [#allocation3], 0
      %s1795 = sshll.u32 [#allocation2], 4
      %s1796 = int_to_ptr.vmem [resolvable:$true] %s1795
      %s1797 = sshll.u32 %s16, 4
      %s1798 = int_to_ptr.hbm [resolvable:$true] %s1797
      %1803 = dma.vmem_to_hbm [thread:$0]  %s1796, 256, %s1798, [#allocation3], 128, 128, 8
    $region69: #{my_transformer_forward.1} parent=1 // pred_fallthru
      _
    // Predicated region
    $region70: #{my_transformer_forward.1} parent=1 // pred_check
      _
    $region71: #{my_transformer_forward.1} parent=1 // pred_check_branch
      %1805 = sbr.rel (0) target = $region73
    $region72: #{my_transformer_forward.1} parent=1 // pred_region
      %1807 = dma.done [#allocation3], 256
    $region73: #{my_transformer_forward.1} parent=1 // pred_fallthru
      _
    %1808 = vsyncpa [#allocation3], 1

</llo_original>
